<compile_context>
chip_gen: v6e
topology: v6e:2x2x1
jax: 0.10.0
libtpu: 0.0.40
codegen_flags: <defaults>
</compile_context>

<pallas_src>
import jax
import jax.numpy as jnp
from jax.experimental import pallas as pl
from jax.experimental.pallas import tpu as pltpu


def _ds_conv_kernel(m00, m01, m02,      # even input rows (kh=0), kw=0,1,2   [Tr*WoP, C]
                    m10, m11, m12,      # odd  input rows (kh=1), kw=0,1,2   [Tr*WoP, C]
                    h0, h1, h2,         # halo even row  (kh=2 tail), kw=0..2 [WoP, C]
                    w_ref,              # [9, C, Tn]   tap-major weights (kh*3 + kw)
                    b_ref,              # [1, Tn]      bias (f32)
                    o_ref,              # [Tr*WoP, Tn] output block
                    acc_ref):           # [Tr*WoP, Tn] f32 scratch accumulator
    f32 = jnp.float32
    M, N = acc_ref.shape
    halo_rows = h0.shape[0]            # = WoP (one output row worth of positions)
    body = M - halo_rows               # = (Tr - 1) * WoP

    mains = (m00, m01, m02, m10, m11, m12)
    halos = (h0, h1, h2)

    # Taps 0..5 (kh in {0, 1}): full-block matmuls, f32 accumulation on the MXU.
    acc = jnp.dot(mains[0][...], w_ref[0], preferred_element_type=f32)
    for t in range(1, 6):
        acc = acc + jnp.dot(mains[t][...], w_ref[t], preferred_element_type=f32)
    acc_ref[...] = acc + b_ref[...].astype(f32)

    # Taps 6..8 (kh == 2): the even-row slabs shifted down by one output row.
    # Rows [WoP:] of the kh=0 blocks are already in VMEM; the last output row of
    # the tile uses the one-row halo block.
    for kw in range(3):
        t = 6 + kw
        if body > 0:
            acc_ref[:body, :] += jnp.dot(mains[kw][halo_rows:, :], w_ref[t],
                                         preferred_element_type=f32)
        acc_ref[body:, :] += jnp.dot(halos[kw][...], w_ref[t],
                                     preferred_element_type=f32)

    o_ref[...] = acc_ref[...].astype(o_ref.dtype)


def downsample_forward(x_nchw, weight, bias, *, compute_dtype=jnp.bfloat16):
    """Exact semantics of nn.Conv2d(C, C, 3, stride=2, padding=1) on NCHW input."""
    B, C, H, W = x_nchw.shape
    Cout = weight.shape[0]
    out_dtype = x_nchw.dtype

    Ho = (H + 2 - 3) // 2 + 1
    Wo = (W + 2 - 3) // 2 + 1

    # ---- tiling -------------------------------------------------------------
    WoP = ((Wo + 7) // 8) * 8                  # sublane-aligned output width
    Tr = max(1, min(Ho, 1024 // WoP))          # output rows per grid step
    nR = -(-Ho // Tr)                          # cdiv
    HoP = nR * Tr                              # padded output height
    Mblk = Tr * WoP                            # output positions per grid step

    # Tile C_out only when the resident weight tile would pressure VMEM (v7x).
    cbytes = jnp.dtype(compute_dtype).itemsize
    if Cout % 256 == 0 and 9 * C * Cout * cbytes > 8 * 1024 * 1024:
        Tn = 256
    else:
        Tn = Cout
    nN = Cout // Tn

    # ---- layout glue (single pass over the input, fused by XLA) -------------
    Hp = 2 * HoP + 2
    Wp = 2 * WoP + 2
    x = jnp.transpose(x_nchw, (0, 2, 3, 1)).astype(compute_dtype)   # NCHW -> NHWC
    xp = jnp.pad(x, ((0, 0), (1, Hp - H - 1), (1, Wp - W - 1), (0, 0)))

    # tf[b, a*3+kw, i, j, c] = xp[b, 2*i + a, 2*j + kw, c]
    slabs = [xp[:, a:a + 2 * (HoP + 1):2, kw:kw + 2 * WoP:2, :]
             for a in (0, 1) for kw in (0, 1, 2)]
    tf = jnp.stack(slabs, axis=1).reshape(B, 6, (HoP + 1) * WoP, C)

    # PyTorch weights [Cout, Cin, 3, 3] -> [9, Cin, Cout], tap index = kh*3 + kw.
    w = jnp.transpose(weight, (2, 3, 1, 0)).reshape(9, C, Cout).astype(compute_dtype)
    b2 = bias.reshape(1, Cout).astype(jnp.float32)

    # ---- pallas call ---------------------------------------------------------
    def main_spec(s):                     # s = a*3 + kw; Tr output rows of tap s
        return pl.BlockSpec((None, None, Mblk, C),
                            lambda n, b, r, s=s: (b, s, r, 0))

    def halo_spec(kw):                    # one extra even-row slab for kh == 2
        return pl.BlockSpec((None, None, WoP, C),
                            lambda n, b, r, kw=kw: (b, kw, Tr * (r + 1), 0))

    grid_spec = pltpu.PrefetchScalarGridSpec(
        num_scalar_prefetch=0,
        grid=(nN, B, nR),
        in_specs=[
            main_spec(0), main_spec(1), main_spec(2),     # kh = 0
            main_spec(3), main_spec(4), main_spec(5),     # kh = 1
            halo_spec(0), halo_spec(1), halo_spec(2),     # kh = 2 halo rows
            pl.BlockSpec((9, C, Tn), lambda n, b, r: (0, 0, n)),
            pl.BlockSpec((1, Tn), lambda n, b, r: (0, n)),
        ],
        out_specs=pl.BlockSpec((None, Mblk, Tn), lambda n, b, r: (b, r, n)),
        scratch_shapes=[pltpu.VMEM((Mblk, Tn), jnp.float32)],
    )

    out = pl.pallas_call(
        _ds_conv_kernel,
        out_shape=jax.ShapeDtypeStruct((B, HoP * WoP, Cout), out_dtype),
        grid_spec=grid_spec,
        compiler_params=pltpu.CompilerParams(
            dimension_semantics=("parallel", "parallel", "parallel"),
            vmem_limit_bytes=48 * 1024 * 1024,
        ),
    )(tf, tf, tf, tf, tf, tf, tf, tf, tf, w, b2)

    out = out.reshape(B, HoP, WoP, Cout)[:, :Ho, :Wo, :]
    # TODO(synk): the NCHW<->NHWC transposes are required only by the PyTorch
    # interface; an NHWC-native caller could drop both HBM passes.
    return jnp.transpose(out, (0, 3, 1, 2))               # back to NCHW


if __name__ == "__main__":
    B, C, H, W = 2, 4, 16, 16

    key = jax.random.PRNGKey(0)
    kx, kw_, kb = jax.random.split(key, 3)

    x = jax.random.normal(kx, (B, C, H, W), dtype=jnp.float32)

    # Deterministic "PyTorch-like" init: uniform(-bound, bound), bound = 1/sqrt(fan_in)
    fan_in = C * 3 * 3
    bound = 1.0 / (fan_in ** 0.5)
    weight = jax.random.uniform(kw_, (C, C, 3, 3), jnp.float32, -bound, bound)
    bias = jax.random.uniform(kb, (C,), jnp.float32, -bound, bound)

    fwd = jax.jit(downsample_forward)
    y = jax.block_until_ready(fwd(x, weight, bias))

    # Reference: XLA convolution with the same semantics as the PyTorch op.
    ref = jax.lax.conv_general_dilated(
        x, weight, window_strides=(2, 2), padding=((1, 1), (1, 1)),
        dimension_numbers=("NCHW", "OIHW", "NCHW")) + bias.reshape(1, C, 1, 1)

    assert y.shape == (B, C, H // 2, W // 2), y.shape
    err = float(jnp.max(jnp.abs(y - ref)))
    # bf16 operands / f32 accumulation -> widened tolerance vs. the f32 reference.
    assert jnp.allclose(y, ref, atol=3e-2, rtol=3e-2), err

    print("KERNEL_OK")
</pallas_src>

<mosaic_0001>
module attributes {stable_mosaic.version = 11 : i64} {
  func.func @_ds_conv_kernel(%arg0: i32, %arg1: i32, %arg2: i32, %arg3: memref<1x1x64x4xbf16, #tpu.memory_space<vmem>>, %arg4: memref<1x1x64x4xbf16, #tpu.memory_space<vmem>>, %arg5: memref<1x1x64x4xbf16, #tpu.memory_space<vmem>>, %arg6: memref<1x1x64x4xbf16, #tpu.memory_space<vmem>>, %arg7: memref<1x1x64x4xbf16, #tpu.memory_space<vmem>>, %arg8: memref<1x1x64x4xbf16, #tpu.memory_space<vmem>>, %arg9: memref<1x1x8x4xbf16, #tpu.memory_space<vmem>>, %arg10: memref<1x1x8x4xbf16, #tpu.memory_space<vmem>>, %arg11: memref<1x1x8x4xbf16, #tpu.memory_space<vmem>>, %arg12: memref<9x4x4xbf16, #tpu.memory_space<vmem>>, %arg13: memref<1x4xf32, #tpu.memory_space<vmem>>, %arg14: memref<1x64x4xf32, #tpu.memory_space<vmem>>, %arg15: memref<64x4xf32, #tpu.memory_space<vmem>>) attributes {dimension_semantics = [#tpu.dimension_semantics<parallel>, #tpu.dimension_semantics<parallel>, #tpu.dimension_semantics<parallel>], iteration_bounds = array<i64: 1, 2, 1>, scalar_prefetch = 0 : i64, scratch_operands = 1 : i64, tpu.core_type = #tpu.core_type<tc>, window_params = [{transform_indices = @transform_0, window_bounds = array<i64: 1, 1, 64, 4>}, {transform_indices = @transform_1, window_bounds = array<i64: 1, 1, 64, 4>}, {transform_indices = @transform_2, window_bounds = array<i64: 1, 1, 64, 4>}, {transform_indices = @transform_3, window_bounds = array<i64: 1, 1, 64, 4>}, {transform_indices = @transform_4, window_bounds = array<i64: 1, 1, 64, 4>}, {transform_indices = @transform_5, window_bounds = array<i64: 1, 1, 64, 4>}, {transform_indices = @transform_6, window_bounds = array<i64: 1, 1, 8, 4>}, {transform_indices = @transform_7, window_bounds = array<i64: 1, 1, 8, 4>}, {transform_indices = @transform_8, window_bounds = array<i64: 1, 1, 8, 4>}, {transform_indices = @transform_9, window_bounds = array<i64: 9, 4, 4>}, {transform_indices = @transform_10, window_bounds = array<i64: 1, 4>}, {transform_indices = @transform_11, window_bounds = array<i64: 1, 64, 4>}]} {
    %c0 = arith.constant 0 : index
    %c0_0 = arith.constant 0 : index
    %c0_1 = arith.constant 0 : index
    %c0_2 = arith.constant 0 : index
    %0 = vector.load %arg3[%c0, %c0_0, %c0_1, %c0_2] : memref<1x1x64x4xbf16, #tpu.memory_space<vmem>>, vector<1x1x64x4xbf16>
    %1 = vector.shape_cast %0 : vector<1x1x64x4xbf16> to vector<64x4xbf16>
    %c0_3 = arith.constant 0 : index
    %c0_4 = arith.constant 0 : index
    %c0_5 = arith.constant 0 : index
    %2 = vector.load %arg12[%c0_3, %c0_4, %c0_5] : memref<9x4x4xbf16, #tpu.memory_space<vmem>>, vector<1x4x4xbf16>
    %3 = vector.shape_cast %2 : vector<1x4x4xbf16> to vector<4x4xbf16>
    %cst = arith.constant dense<0.000000e+00> : vector<64x4xf32>
    %4 = tpu.matmul %1, %3, %cst {dimension_numbers = #tpu.dot_dimension_numbers<[1], [0], [0], [1], [0, 0, 1, 1], [], []>} : vector<64x4xbf16>, vector<4x4xbf16>, vector<64x4xf32> -> vector<64x4xf32>
    %c0_6 = arith.constant 0 : index
    %c0_7 = arith.constant 0 : index
    %c0_8 = arith.constant 0 : index
    %c0_9 = arith.constant 0 : index
    %5 = vector.load %arg4[%c0_6, %c0_7, %c0_8, %c0_9] : memref<1x1x64x4xbf16, #tpu.memory_space<vmem>>, vector<1x1x64x4xbf16>
    %6 = vector.shape_cast %5 : vector<1x1x64x4xbf16> to vector<64x4xbf16>
    %c1 = arith.constant 1 : index
    %c0_10 = arith.constant 0 : index
    %c0_11 = arith.constant 0 : index
    %7 = vector.load %arg12[%c1, %c0_10, %c0_11] : memref<9x4x4xbf16, #tpu.memory_space<vmem>>, vector<1x4x4xbf16>
    %8 = vector.shape_cast %7 : vector<1x4x4xbf16> to vector<4x4xbf16>
    %cst_12 = arith.constant dense<0.000000e+00> : vector<64x4xf32>
    %9 = tpu.matmul %6, %8, %cst_12 {dimension_numbers = #tpu.dot_dimension_numbers<[1], [0], [0], [1], [0, 0, 1, 1], [], []>} : vector<64x4xbf16>, vector<4x4xbf16>, vector<64x4xf32> -> vector<64x4xf32>
    %10 = arith.addf %4, %9 : vector<64x4xf32>
    %c0_13 = arith.constant 0 : index
    %c0_14 = arith.constant 0 : index
    %c0_15 = arith.constant 0 : index
    %c0_16 = arith.constant 0 : index
    %11 = vector.load %arg5[%c0_13, %c0_14, %c0_15, %c0_16] : memref<1x1x64x4xbf16, #tpu.memory_space<vmem>>, vector<1x1x64x4xbf16>
    %12 = vector.shape_cast %11 : vector<1x1x64x4xbf16> to vector<64x4xbf16>
    %c2 = arith.constant 2 : index
    %c0_17 = arith.constant 0 : index
    %c0_18 = arith.constant 0 : index
    %13 = vector.load %arg12[%c2, %c0_17, %c0_18] : memref<9x4x4xbf16, #tpu.memory_space<vmem>>, vector<1x4x4xbf16>
    %14 = vector.shape_cast %13 : vector<1x4x4xbf16> to vector<4x4xbf16>
    %cst_19 = arith.constant dense<0.000000e+00> : vector<64x4xf32>
    %15 = tpu.matmul %12, %14, %cst_19 {dimension_numbers = #tpu.dot_dimension_numbers<[1], [0], [0], [1], [0, 0, 1, 1], [], []>} : vector<64x4xbf16>, vector<4x4xbf16>, vector<64x4xf32> -> vector<64x4xf32>
    %16 = arith.addf %10, %15 : vector<64x4xf32>
    %c0_20 = arith.constant 0 : index
    %c0_21 = arith.constant 0 : index
    %c0_22 = arith.constant 0 : index
    %c0_23 = arith.constant 0 : index
    %17 = vector.load %arg6[%c0_20, %c0_21, %c0_22, %c0_23] : memref<1x1x64x4xbf16, #tpu.memory_space<vmem>>, vector<1x1x64x4xbf16>
    %18 = vector.shape_cast %17 : vector<1x1x64x4xbf16> to vector<64x4xbf16>
    %c3 = arith.constant 3 : index
    %c0_24 = arith.constant 0 : index
    %c0_25 = arith.constant 0 : index
    %19 = vector.load %arg12[%c3, %c0_24, %c0_25] : memref<9x4x4xbf16, #tpu.memory_space<vmem>>, vector<1x4x4xbf16>
    %20 = vector.shape_cast %19 : vector<1x4x4xbf16> to vector<4x4xbf16>
    %cst_26 = arith.constant dense<0.000000e+00> : vector<64x4xf32>
    %21 = tpu.matmul %18, %20, %cst_26 {dimension_numbers = #tpu.dot_dimension_numbers<[1], [0], [0], [1], [0, 0, 1, 1], [], []>} : vector<64x4xbf16>, vector<4x4xbf16>, vector<64x4xf32> -> vector<64x4xf32>
    %22 = arith.addf %16, %21 : vector<64x4xf32>
    %c0_27 = arith.constant 0 : index
    %c0_28 = arith.constant 0 : index
    %c0_29 = arith.constant 0 : index
    %c0_30 = arith.constant 0 : index
    %23 = vector.load %arg7[%c0_27, %c0_28, %c0_29, %c0_30] : memref<1x1x64x4xbf16, #tpu.memory_space<vmem>>, vector<1x1x64x4xbf16>
    %24 = vector.shape_cast %23 : vector<1x1x64x4xbf16> to vector<64x4xbf16>
    %c4 = arith.constant 4 : index
    %c0_31 = arith.constant 0 : index
    %c0_32 = arith.constant 0 : index
    %25 = vector.load %arg12[%c4, %c0_31, %c0_32] : memref<9x4x4xbf16, #tpu.memory_space<vmem>>, vector<1x4x4xbf16>
    %26 = vector.shape_cast %25 : vector<1x4x4xbf16> to vector<4x4xbf16>
    %cst_33 = arith.constant dense<0.000000e+00> : vector<64x4xf32>
    %27 = tpu.matmul %24, %26, %cst_33 {dimension_numbers = #tpu.dot_dimension_numbers<[1], [0], [0], [1], [0, 0, 1, 1], [], []>} : vector<64x4xbf16>, vector<4x4xbf16>, vector<64x4xf32> -> vector<64x4xf32>
    %28 = arith.addf %22, %27 : vector<64x4xf32>
    %c0_34 = arith.constant 0 : index
    %c0_35 = arith.constant 0 : index
    %c0_36 = arith.constant 0 : index
    %c0_37 = arith.constant 0 : index
    %29 = vector.load %arg8[%c0_34, %c0_35, %c0_36, %c0_37] : memref<1x1x64x4xbf16, #tpu.memory_space<vmem>>, vector<1x1x64x4xbf16>
    %30 = vector.shape_cast %29 : vector<1x1x64x4xbf16> to vector<64x4xbf16>
    %c5 = arith.constant 5 : index
    %c0_38 = arith.constant 0 : index
    %c0_39 = arith.constant 0 : index
    %31 = vector.load %arg12[%c5, %c0_38, %c0_39] : memref<9x4x4xbf16, #tpu.memory_space<vmem>>, vector<1x4x4xbf16>
    %32 = vector.shape_cast %31 : vector<1x4x4xbf16> to vector<4x4xbf16>
    %cst_40 = arith.constant dense<0.000000e+00> : vector<64x4xf32>
    %33 = tpu.matmul %30, %32, %cst_40 {dimension_numbers = #tpu.dot_dimension_numbers<[1], [0], [0], [1], [0, 0, 1, 1], [], []>} : vector<64x4xbf16>, vector<4x4xbf16>, vector<64x4xf32> -> vector<64x4xf32>
    %34 = arith.addf %28, %33 : vector<64x4xf32>
    %c0_41 = arith.constant 0 : index
    %c0_42 = arith.constant 0 : index
    %35 = vector.load %arg13[%c0_41, %c0_42] : memref<1x4xf32, #tpu.memory_space<vmem>>, vector<1x4xf32>
    %36 = vector.broadcast %35 : vector<1x4xf32> to vector<64x4xf32>
    %37 = arith.addf %34, %36 : vector<64x4xf32>
    %c0_43 = arith.constant 0 : index
    %c0_44 = arith.constant 0 : index
    %38 = vector.load %arg15[%c0_43, %c0_44] : memref<64x4xf32, #tpu.memory_space<vmem>>, vector<64x4xf32>
    tpu.vector_store %arg15[%c0_43, %c0_44], %37 {strides = array<i32>} : memref<64x4xf32, #tpu.memory_space<vmem>>, vector<64x4xf32>,
    %c0_45 = arith.constant 0 : index
    %c0_46 = arith.constant 0 : index
    %39 = vector.load %arg15[%c0_45, %c0_46] : memref<64x4xf32, #tpu.memory_space<vmem>>, vector<56x4xf32>
    %c0_47 = arith.constant 0 : index
    %c0_48 = arith.constant 0 : index
    %c8 = arith.constant 8 : index
    %c0_49 = arith.constant 0 : index
    %40 = vector.load %arg3[%c0_47, %c0_48, %c8, %c0_49] : memref<1x1x64x4xbf16, #tpu.memory_space<vmem>>, vector<1x1x56x4xbf16>
    %41 = vector.shape_cast %40 : vector<1x1x56x4xbf16> to vector<56x4xbf16>
    %c6 = arith.constant 6 : index
    %c0_50 = arith.constant 0 : index
    %c0_51 = arith.constant 0 : index
    %42 = vector.load %arg12[%c6, %c0_50, %c0_51] : memref<9x4x4xbf16, #tpu.memory_space<vmem>>, vector<1x4x4xbf16>
    %43 = vector.shape_cast %42 : vector<1x4x4xbf16> to vector<4x4xbf16>
    %cst_52 = arith.constant dense<0.000000e+00> : vector<56x4xf32>
    %44 = tpu.matmul %41, %43, %cst_52 {dimension_numbers = #tpu.dot_dimension_numbers<[1], [0], [0], [1], [0, 0, 1, 1], [], []>} : vector<56x4xbf16>, vector<4x4xbf16>, vector<56x4xf32> -> vector<56x4xf32>
    %45 = arith.addf %39, %44 : vector<56x4xf32>
    %c0_53 = arith.constant 0 : index
    %c0_54 = arith.constant 0 : index
    %46 = vector.load %arg15[%c0_53, %c0_54] : memref<64x4xf32, #tpu.memory_space<vmem>>, vector<56x4xf32>
    tpu.vector_store %arg15[%c0_53, %c0_54], %45 {strides = array<i32>} : memref<64x4xf32, #tpu.memory_space<vmem>>, vector<56x4xf32>,
    %c56 = arith.constant 56 : index
    %c0_55 = arith.constant 0 : index
    %47 = vector.load %arg15[%c56, %c0_55] : memref<64x4xf32, #tpu.memory_space<vmem>>, vector<8x4xf32>
    %c0_56 = arith.constant 0 : index
    %c0_57 = arith.constant 0 : index
    %c0_58 = arith.constant 0 : index
    %c0_59 = arith.constant 0 : index
    %48 = vector.load %arg9[%c0_56, %c0_57, %c0_58, %c0_59] : memref<1x1x8x4xbf16, #tpu.memory_space<vmem>>, vector<1x1x8x4xbf16>
    %49 = vector.shape_cast %48 : vector<1x1x8x4xbf16> to vector<8x4xbf16>
    %c6_60 = arith.constant 6 : index
    %c0_61 = arith.constant 0 : index
    %c0_62 = arith.constant 0 : index
    %50 = vector.load %arg12[%c6_60, %c0_61, %c0_62] : memref<9x4x4xbf16, #tpu.memory_space<vmem>>, vector<1x4x4xbf16>
    %51 = vector.shape_cast %50 : vector<1x4x4xbf16> to vector<4x4xbf16>
    %cst_63 = arith.constant dense<0.000000e+00> : vector<8x4xf32>
    %52 = tpu.matmul %49, %51, %cst_63 {dimension_numbers = #tpu.dot_dimension_numbers<[1], [0], [0], [1], [0, 0, 1, 1], [], []>} : vector<8x4xbf16>, vector<4x4xbf16>, vector<8x4xf32> -> vector<8x4xf32>
    %53 = arith.addf %47, %52 : vector<8x4xf32>
    %c56_64 = arith.constant 56 : index
    %c0_65 = arith.constant 0 : index
    %54 = vector.load %arg15[%c56_64, %c0_65] : memref<64x4xf32, #tpu.memory_space<vmem>>, vector<8x4xf32>
    tpu.vector_store %arg15[%c56_64, %c0_65], %53 {strides = array<i32>} : memref<64x4xf32, #tpu.memory_space<vmem>>, vector<8x4xf32>,
    %c0_66 = arith.constant 0 : index
    %c0_67 = arith.constant 0 : index
    %55 = vector.load %arg15[%c0_66, %c0_67] : memref<64x4xf32, #tpu.memory_space<vmem>>, vector<56x4xf32>
    %c0_68 = arith.constant 0 : index
    %c0_69 = arith.constant 0 : index
    %c8_70 = arith.constant 8 : index
    %c0_71 = arith.constant 0 : index
    %56 = vector.load %arg4[%c0_68, %c0_69, %c8_70, %c0_71] : memref<1x1x64x4xbf16, #tpu.memory_space<vmem>>, vector<1x1x56x4xbf16>
    %57 = vector.shape_cast %56 : vector<1x1x56x4xbf16> to vector<56x4xbf16>
    %c7 = arith.constant 7 : index
    %c0_72 = arith.constant 0 : index
    %c0_73 = arith.constant 0 : index
    %58 = vector.load %arg12[%c7, %c0_72, %c0_73] : memref<9x4x4xbf16, #tpu.memory_space<vmem>>, vector<1x4x4xbf16>
    %59 = vector.shape_cast %58 : vector<1x4x4xbf16> to vector<4x4xbf16>
    %cst_74 = arith.constant dense<0.000000e+00> : vector<56x4xf32>
    %60 = tpu.matmul %57, %59, %cst_74 {dimension_numbers = #tpu.dot_dimension_numbers<[1], [0], [0], [1], [0, 0, 1, 1], [], []>} : vector<56x4xbf16>, vector<4x4xbf16>, vector<56x4xf32> -> vector<56x4xf32>
    %61 = arith.addf %55, %60 : vector<56x4xf32>
    %c0_75 = arith.constant 0 : index
    %c0_76 = arith.constant 0 : index
    %62 = vector.load %arg15[%c0_75, %c0_76] : memref<64x4xf32, #tpu.memory_space<vmem>>, vector<56x4xf32>
    tpu.vector_store %arg15[%c0_75, %c0_76], %61 {strides = array<i32>} : memref<64x4xf32, #tpu.memory_space<vmem>>, vector<56x4xf32>,
    %c56_77 = arith.constant 56 : index
    %c0_78 = arith.constant 0 : index
    %63 = vector.load %arg15[%c56_77, %c0_78] : memref<64x4xf32, #tpu.memory_space<vmem>>, vector<8x4xf32>
    %c0_79 = arith.constant 0 : index
    %c0_80 = arith.constant 0 : index
    %c0_81 = arith.constant 0 : index
    %c0_82 = arith.constant 0 : index
    %64 = vector.load %arg10[%c0_79, %c0_80, %c0_81, %c0_82] : memref<1x1x8x4xbf16, #tpu.memory_space<vmem>>, vector<1x1x8x4xbf16>
    %65 = vector.shape_cast %64 : vector<1x1x8x4xbf16> to vector<8x4xbf16>
    %c7_83 = arith.constant 7 : index
    %c0_84 = arith.constant 0 : index
    %c0_85 = arith.constant 0 : index
    %66 = vector.load %arg12[%c7_83, %c0_84, %c0_85] : memref<9x4x4xbf16, #tpu.memory_space<vmem>>, vector<1x4x4xbf16>
    %67 = vector.shape_cast %66 : vector<1x4x4xbf16> to vector<4x4xbf16>
    %cst_86 = arith.constant dense<0.000000e+00> : vector<8x4xf32>
    %68 = tpu.matmul %65, %67, %cst_86 {dimension_numbers = #tpu.dot_dimension_numbers<[1], [0], [0], [1], [0, 0, 1, 1], [], []>} : vector<8x4xbf16>, vector<4x4xbf16>, vector<8x4xf32> -> vector<8x4xf32>
    %69 = arith.addf %63, %68 : vector<8x4xf32>
    %c56_87 = arith.constant 56 : index
    %c0_88 = arith.constant 0 : index
    %70 = vector.load %arg15[%c56_87, %c0_88] : memref<64x4xf32, #tpu.memory_space<vmem>>, vector<8x4xf32>
    tpu.vector_store %arg15[%c56_87, %c0_88], %69 {strides = array<i32>} : memref<64x4xf32, #tpu.memory_space<vmem>>, vector<8x4xf32>,
    %c0_89 = arith.constant 0 : index
    %c0_90 = arith.constant 0 : index
    %71 = vector.load %arg15[%c0_89, %c0_90] : memref<64x4xf32, #tpu.memory_space<vmem>>, vector<56x4xf32>
    %c0_91 = arith.constant 0 : index
    %c0_92 = arith.constant 0 : index
    %c8_93 = arith.constant 8 : index
    %c0_94 = arith.constant 0 : index
    %72 = vector.load %arg5[%c0_91, %c0_92, %c8_93, %c0_94] : memref<1x1x64x4xbf16, #tpu.memory_space<vmem>>, vector<1x1x56x4xbf16>
    %73 = vector.shape_cast %72 : vector<1x1x56x4xbf16> to vector<56x4xbf16>
    %c8_95 = arith.constant 8 : index
    %c0_96 = arith.constant 0 : index
    %c0_97 = arith.constant 0 : index
    %74 = vector.load %arg12[%c8_95, %c0_96, %c0_97] : memref<9x4x4xbf16, #tpu.memory_space<vmem>>, vector<1x4x4xbf16>
    %75 = vector.shape_cast %74 : vector<1x4x4xbf16> to vector<4x4xbf16>
    %cst_98 = arith.constant dense<0.000000e+00> : vector<56x4xf32>
    %76 = tpu.matmul %73, %75, %cst_98 {dimension_numbers = #tpu.dot_dimension_numbers<[1], [0], [0], [1], [0, 0, 1, 1], [], []>} : vector<56x4xbf16>, vector<4x4xbf16>, vector<56x4xf32> -> vector<56x4xf32>
    %77 = arith.addf %71, %76 : vector<56x4xf32>
    %c0_99 = arith.constant 0 : index
    %c0_100 = arith.constant 0 : index
    %78 = vector.load %arg15[%c0_99, %c0_100] : memref<64x4xf32, #tpu.memory_space<vmem>>, vector<56x4xf32>
    tpu.vector_store %arg15[%c0_99, %c0_100], %77 {strides = array<i32>} : memref<64x4xf32, #tpu.memory_space<vmem>>, vector<56x4xf32>,
    %c56_101 = arith.constant 56 : index
    %c0_102 = arith.constant 0 : index
    %79 = vector.load %arg15[%c56_101, %c0_102] : memref<64x4xf32, #tpu.memory_space<vmem>>, vector<8x4xf32>
    %c0_103 = arith.constant 0 : index
    %c0_104 = arith.constant 0 : index
    %c0_105 = arith.constant 0 : index
    %c0_106 = arith.constant 0 : index
    %80 = vector.load %arg11[%c0_103, %c0_104, %c0_105, %c0_106] : memref<1x1x8x4xbf16, #tpu.memory_space<vmem>>, vector<1x1x8x4xbf16>
    %81 = vector.shape_cast %80 : vector<1x1x8x4xbf16> to vector<8x4xbf16>
    %c8_107 = arith.constant 8 : index
    %c0_108 = arith.constant 0 : index
    %c0_109 = arith.constant 0 : index
    %82 = vector.load %arg12[%c8_107, %c0_108, %c0_109] : memref<9x4x4xbf16, #tpu.memory_space<vmem>>, vector<1x4x4xbf16>
    %83 = vector.shape_cast %82 : vector<1x4x4xbf16> to vector<4x4xbf16>
    %cst_110 = arith.constant dense<0.000000e+00> : vector<8x4xf32>
    %84 = tpu.matmul %81, %83, %cst_110 {dimension_numbers = #tpu.dot_dimension_numbers<[1], [0], [0], [1], [0, 0, 1, 1], [], []>} : vector<8x4xbf16>, vector<4x4xbf16>, vector<8x4xf32> -> vector<8x4xf32>
    %85 = arith.addf %79, %84 : vector<8x4xf32>
    %c56_111 = arith.constant 56 : index
    %c0_112 = arith.constant 0 : index
    %86 = vector.load %arg15[%c56_111, %c0_112] : memref<64x4xf32, #tpu.memory_space<vmem>>, vector<8x4xf32>
    tpu.vector_store %arg15[%c56_111, %c0_112], %85 {strides = array<i32>} : memref<64x4xf32, #tpu.memory_space<vmem>>, vector<8x4xf32>,
    %c0_113 = arith.constant 0 : index
    %c0_114 = arith.constant 0 : index
    %87 = vector.load %arg15[%c0_113, %c0_114] : memref<64x4xf32, #tpu.memory_space<vmem>>, vector<64x4xf32>
    %c0_115 = arith.constant 0 : index
    %c0_116 = arith.constant 0 : index
    %c0_117 = arith.constant 0 : index
    %88 = vector.load %arg14[%c0_115, %c0_116, %c0_117] : memref<1x64x4xf32, #tpu.memory_space<vmem>>, vector<1x64x4xf32>
    %89 = vector.shape_cast %88 : vector<1x64x4xf32> to vector<64x4xf32>
    %90 = vector.shape_cast %87 : vector<64x4xf32> to vector<1x64x4xf32>
    tpu.vector_store %arg14[%c0_115, %c0_116, %c0_117], %90 {strides = array<i32>} : memref<1x64x4xf32, #tpu.memory_space<vmem>>, vector<1x64x4xf32>,
    return
  }
  func.func @transform_0(%arg0: i32, %arg1: i32, %arg2: i32) -> (i32, i32, i32, i32) {
    %c0_i32 = arith.constant 0 : i32
    %c0_i32_0 = arith.constant 0 : i32
    %c0_i32_1 = arith.constant 0 : i32
    return %arg1, %c0_i32, %arg2, %c0_i32_0 : i32, i32, i32, i32
  }
  func.func @transform_1(%arg0: i32, %arg1: i32, %arg2: i32) -> (i32, i32, i32, i32) {
    %c1_i32 = arith.constant 1 : i32
    %c0_i32 = arith.constant 0 : i32
    %c0_i32_0 = arith.constant 0 : i32
    return %arg1, %c1_i32, %arg2, %c0_i32 : i32, i32, i32, i32
  }
  func.func @transform_2(%arg0: i32, %arg1: i32, %arg2: i32) -> (i32, i32, i32, i32) {
    %c2_i32 = arith.constant 2 : i32
    %c0_i32 = arith.constant 0 : i32
    %c0_i32_0 = arith.constant 0 : i32
    return %arg1, %c2_i32, %arg2, %c0_i32 : i32, i32, i32, i32
  }
  func.func @transform_3(%arg0: i32, %arg1: i32, %arg2: i32) -> (i32, i32, i32, i32) {
    %c3_i32 = arith.constant 3 : i32
    %c0_i32 = arith.constant 0 : i32
    %c0_i32_0 = arith.constant 0 : i32
    return %arg1, %c3_i32, %arg2, %c0_i32 : i32, i32, i32, i32
  }
  func.func @transform_4(%arg0: i32, %arg1: i32, %arg2: i32) -> (i32, i32, i32, i32) {
    %c4_i32 = arith.constant 4 : i32
    %c0_i32 = arith.constant 0 : i32
    %c0_i32_0 = arith.constant 0 : i32
    return %arg1, %c4_i32, %arg2, %c0_i32 : i32, i32, i32, i32
  }
  func.func @transform_5(%arg0: i32, %arg1: i32, %arg2: i32) -> (i32, i32, i32, i32) {
    %c5_i32 = arith.constant 5 : i32
    %c0_i32 = arith.constant 0 : i32
    %c0_i32_0 = arith.constant 0 : i32
    return %arg1, %c5_i32, %arg2, %c0_i32 : i32, i32, i32, i32
  }
  func.func @transform_6(%arg0: i32, %arg1: i32, %arg2: i32) -> (i32, i32, i32, i32) {
    %c1_i32 = arith.constant 1 : i32
    %0 = arith.addi %arg2, %c1_i32 : i32
    %c8_i32 = arith.constant 8 : i32
    %1 = arith.muli %c8_i32, %0 : i32
    %c0_i32 = arith.constant 0 : i32
    %c0_i32_0 = arith.constant 0 : i32
    %c0_i32_1 = arith.constant 0 : i32
    return %arg1, %c0_i32, %1, %c0_i32_0 : i32, i32, i32, i32
  }
  func.func @transform_7(%arg0: i32, %arg1: i32, %arg2: i32) -> (i32, i32, i32, i32) {
    %c1_i32 = arith.constant 1 : i32
    %0 = arith.addi %arg2, %c1_i32 : i32
    %c8_i32 = arith.constant 8 : i32
    %1 = arith.muli %c8_i32, %0 : i32
    %c1_i32_0 = arith.constant 1 : i32
    %c0_i32 = arith.constant 0 : i32
    %c0_i32_1 = arith.constant 0 : i32
    return %arg1, %c1_i32_0, %1, %c0_i32 : i32, i32, i32, i32
  }
  func.func @transform_8(%arg0: i32, %arg1: i32, %arg2: i32) -> (i32, i32, i32, i32) {
    %c1_i32 = arith.constant 1 : i32
    %0 = arith.addi %arg2, %c1_i32 : i32
    %c8_i32 = arith.constant 8 : i32
    %1 = arith.muli %c8_i32, %0 : i32
    %c2_i32 = arith.constant 2 : i32
    %c0_i32 = arith.constant 0 : i32
    %c0_i32_0 = arith.constant 0 : i32
    return %arg1, %c2_i32, %1, %c0_i32 : i32, i32, i32, i32
  }
  func.func @transform_9(%arg0: i32, %arg1: i32, %arg2: i32) -> (i32, i32, i32) {
    %c0_i32 = arith.constant 0 : i32
    %c0_i32_0 = arith.constant 0 : i32
    %c0_i32_1 = arith.constant 0 : i32
    return %c0_i32, %c0_i32_0, %arg0 : i32, i32, i32
  }
  func.func @transform_10(%arg0: i32, %arg1: i32, %arg2: i32) -> (i32, i32) {
    %c0_i32 = arith.constant 0 : i32
    %c0_i32_0 = arith.constant 0 : i32
    return %c0_i32, %arg0 : i32, i32
  }
  func.func @transform_11(%arg0: i32, %arg1: i32, %arg2: i32) -> (i32, i32, i32) {
    %c0_i32 = arith.constant 0 : i32
    return %arg1, %arg2, %arg0 : i32, i32, i32
  }
}

</mosaic_0001>

<llo_original>
// kernel: downsample_forward.1
$region0: #{downsample_forward.1}
  #allocation0 [shape = 'u32[]', space=smem, size = 0x4, offset = 0x4, fixed_abs, tag = 'smem constant byte address 0x4 - core index']
  #allocation1 [shape = 'u32[144,128]{1,0:T(1,128)}', space=vmem, size = 0x12000, scoped, tag = 'internal scratch']
  #allocation2 [shape = 'f32[64,4]{1,0:T(8,128)}', space=vmem, size = 0x8000, scoped, tag = 'scratch operand']
  %s0 = inlined_call_operand.vmem [shape: bf16[2,6,72,4], index: 0, kind: input, shape index: {}, may-alias: {0,1,2,3,4,5,6,7,8}]
  %s1 = inlined_call_operand.vmem [shape: bf16[2,6,72,4], index: 1, kind: input, shape index: {}, may-alias: {0,1,2,3,4,5,6,7,8}]
  %s2 = inlined_call_operand.vmem [shape: bf16[2,6,72,4], index: 2, kind: input, shape index: {}, may-alias: {0,1,2,3,4,5,6,7,8}]
  %s3 = inlined_call_operand.vmem [shape: bf16[2,6,72,4], index: 3, kind: input, shape index: {}, may-alias: {0,1,2,3,4,5,6,7,8}]
  %s4 = inlined_call_operand.vmem [shape: bf16[2,6,72,4], index: 4, kind: input, shape index: {}, may-alias: {0,1,2,3,4,5,6,7,8}]
  %s5 = inlined_call_operand.vmem [shape: bf16[2,6,72,4], index: 5, kind: input, shape index: {}, may-alias: {0,1,2,3,4,5,6,7,8}]
  %s6 = inlined_call_operand.vmem [shape: bf16[2,6,72,4], index: 6, kind: input, shape index: {}, may-alias: {0,1,2,3,4,5,6,7,8}]
  %s7 = inlined_call_operand.vmem [shape: bf16[2,6,72,4], index: 7, kind: input, shape index: {}, may-alias: {0,1,2,3,4,5,6,7,8}]
  %s8 = inlined_call_operand.vmem [shape: bf16[2,6,72,4], index: 8, kind: input, shape index: {}, may-alias: {0,1,2,3,4,5,6,7,8}]
  %s9 = inlined_call_operand.vmem [shape: bf16[9,4,4], index: 9, kind: input, shape index: {}]
  %s10 = inlined_call_operand.vmem [shape: f32[1,4], index: 10, kind: input, shape index: {}]
  %s11 = inlined_call_operand.vmem [shape: f32[2,64,4], index: 11, kind: output, shape index: {}]
  %s12 = sld [smem:[#allocation0]]
  $region77: #{downsample_forward.1} parent=0
    _
  %s14 = ssub.s32 1, %s12
  %s15 = scalar_select 0, %s14, %s12
  loop: start=0, step=1, limit=4
  $region2: #{downsample_forward.1} parent=0 // loop_pre_header
    _
  $region3: #{downsample_forward.1} parent=0 // loop_header
    %s17 = sphi 0, %s21
    %p18 = scmp.ge.s32.totalorder %s17, 4
    %s24 = sphi 0, %s43
    %s25 = sphi 0, %s39
    %s26 = sphi 0, %s35
    %s27 = sphi 0, %s24
    %s28 = sphi 0, %s25
    %s29 = sphi 0, %s26
    %s30 = sphi 0, %s27
    %s31 = sphi 0, %s28
    %s32 = sphi 0, %s29
    %s48 = sphi 0, %s50
    %s51 = sphi 0, %s48
    %s52 = sphi 0, %s51
    %s68 = sphi 0, %s52
    %s76 = sphi 0, %s78
    %s79 = sphi 0, %s76
    %s80 = sphi 0, %s79
    %s96 = sphi 0, %s80
    %s104 = sphi 0, %s106
    %s107 = sphi 0, %s104
    %s108 = sphi 0, %s107
    %s124 = sphi 0, %s108
    %s132 = sphi 0, %s134
    %s135 = sphi 0, %s132
    %s136 = sphi 0, %s135
    %s152 = sphi 0, %s136
    %s160 = sphi 0, %s162
    %s163 = sphi 0, %s160
    %s164 = sphi 0, %s163
    %s180 = sphi 0, %s164
    %s188 = sphi 0, %s190
    %s191 = sphi 0, %s188
    %s192 = sphi 0, %s191
    %s208 = sphi 0, %s192
    %s220 = sphi 0, %s222
    %s223 = sphi 0, %s220
    %s224 = sphi 0, %s223
    %s240 = sphi 0, %s224
    %s252 = sphi 0, %s254
    %s255 = sphi 0, %s252
    %s256 = sphi 0, %s255
    %s272 = sphi 0, %s256
    %s284 = sphi 0, %s286
    %s287 = sphi 0, %s284
    %s288 = sphi 0, %s287
    %s304 = sphi 0, %s288
    %s310 = sphi 0, %s312
    %s313 = sphi 0, %s310
    %s314 = sphi 0, %s313
    %s330 = sphi 0, %s314
    %s336 = sphi 0, %s338
    %s339 = sphi 0, %s336
    %s340 = sphi 0, %s339
    %s356 = sphi 0, %s340
    %s366 = sphi 0, %s368
    %s369 = sphi 0, %s366
    %s370 = sphi 0, %s369
    %s386 = sphi 0, %s370
  $region4: #{downsample_forward.1} parent=0 // loop_header_branch
    %20 = sbr.rel (%p18) target = $region8
  $region5: #{downsample_forward.1} parent=0 // loop_body
    %s22 = ssub.s32 %s17, 1
    %s23 = ssub.s32 %s17, 2
    %s33 = sadd.s32 1, %s26
    %p34 = scmp.ge.s32.totalorder %s33, 1
    %s35 = scalar_select %p34, 0, %s33
    %s36 = sadd.s32 1, %s25
    %s37 = scalar_select %p34, %s36, %s25
    %p38 = scmp.ge.s32.totalorder %s37, 2
    %s39 = scalar_select %p38, 0, %s37
    %s40 = sadd.s32 1, %s24
    %s41 = scalar_select %p38, %s40, %s24
    %p42 = scmp.ge.s32.totalorder %s41, 1
    %s43 = scalar_select %p42, 0, %s41
    %s44 = ssub.s32 %s25, %s39
    %s45 = ssub.s32 %s26, %s35
    %s46 = sor.u32 %s44, %s45
    %p47 = scmp.eq.s32.totalorder %s46, 0
    %s49 = sadd.s32 %s48, 1
    %s50 = scalar_select %p47, %s48, %s49
    %p53 = pneg %p47
    %p54 = scmp.eq.s32.totalorder %s17, 1
    %p55 = por %p53, %p54
    %p56 = scmp.ne.s32.totalorder %s48, %s51
    %p57 = scmp.eq.s32.totalorder %s17, 0
    %p58 = por %p56, %p57
    %p59 = scmp.ne.s32.totalorder %s48, %s51
    %p60 = scmp.eq.s32.totalorder %s22, 1
    %p61 = por %p59, %p60
    %p62 = scmp.ne.s32.totalorder %s51, %s52
    %p63 = scmp.eq.s32.totalorder %s22, 0
    %p64 = por %p62, %p63
    %p65 = scmp.ne.s32.totalorder %s51, %s52
    %p66 = scmp.eq.s32.totalorder %s23, 1
    %p67 = por %p65, %p66
    %p69 = scmp.ne.s32.totalorder %s52, %s68
    %p70 = scmp.eq.s32.totalorder %s23, 0
    %p71 = por %p69, %p70
    %s72 = ssub.s32 %s25, %s39
    %s73 = ssub.s32 %s26, %s35
    %s74 = sor.u32 %s72, %s73
    %p75 = scmp.eq.s32.totalorder %s74, 0
    %s77 = sadd.s32 %s76, 1
    %s78 = scalar_select %p75, %s76, %s77
    %p81 = pneg %p75
    %p82 = scmp.eq.s32.totalorder %s17, 1
    %p83 = por %p81, %p82
    %p84 = scmp.ne.s32.totalorder %s76, %s79
    %p85 = scmp.eq.s32.totalorder %s17, 0
    %p86 = por %p84, %p85
    %p87 = scmp.ne.s32.totalorder %s76, %s79
    %p88 = scmp.eq.s32.totalorder %s22, 1
    %p89 = por %p87, %p88
    %p90 = scmp.ne.s32.totalorder %s79, %s80
    %p91 = scmp.eq.s32.totalorder %s22, 0
    %p92 = por %p90, %p91
    %p93 = scmp.ne.s32.totalorder %s79, %s80
    %p94 = scmp.eq.s32.totalorder %s23, 1
    %p95 = por %p93, %p94
    %p97 = scmp.ne.s32.totalorder %s80, %s96
    %p98 = scmp.eq.s32.totalorder %s23, 0
    %p99 = por %p97, %p98
    %s100 = ssub.s32 %s25, %s39
    %s101 = ssub.s32 %s26, %s35
    %s102 = sor.u32 %s100, %s101
    %p103 = scmp.eq.s32.totalorder %s102, 0
    %s105 = sadd.s32 %s104, 1
    %s106 = scalar_select %p103, %s104, %s105
    %p109 = pneg %p103
    %p110 = scmp.eq.s32.totalorder %s17, 1
    %p111 = por %p109, %p110
    %p112 = scmp.ne.s32.totalorder %s104, %s107
    %p113 = scmp.eq.s32.totalorder %s17, 0
    %p114 = por %p112, %p113
    %p115 = scmp.ne.s32.totalorder %s104, %s107
    %p116 = scmp.eq.s32.totalorder %s22, 1
    %p117 = por %p115, %p116
    %p118 = scmp.ne.s32.totalorder %s107, %s108
    %p119 = scmp.eq.s32.totalorder %s22, 0
    %p120 = por %p118, %p119
    %p121 = scmp.ne.s32.totalorder %s107, %s108
    %p122 = scmp.eq.s32.totalorder %s23, 1
    %p123 = por %p121, %p122
    %p125 = scmp.ne.s32.totalorder %s108, %s124
    %p126 = scmp.eq.s32.totalorder %s23, 0
    %p127 = por %p125, %p126
    %s128 = ssub.s32 %s25, %s39
    %s129 = ssub.s32 %s26, %s35
    %s130 = sor.u32 %s128, %s129
    %p131 = scmp.eq.s32.totalorder %s130, 0
    %s133 = sadd.s32 %s132, 1
    %s134 = scalar_select %p131, %s132, %s133
    %p137 = pneg %p131
    %p138 = scmp.eq.s32.totalorder %s17, 1
    %p139 = por %p137, %p138
    %p140 = scmp.ne.s32.totalorder %s132, %s135
    %p141 = scmp.eq.s32.totalorder %s17, 0
    %p142 = por %p140, %p141
    %p143 = scmp.ne.s32.totalorder %s132, %s135
    %p144 = scmp.eq.s32.totalorder %s22, 1
    %p145 = por %p143, %p144
    %p146 = scmp.ne.s32.totalorder %s135, %s136
    %p147 = scmp.eq.s32.totalorder %s22, 0
    %p148 = por %p146, %p147
    %p149 = scmp.ne.s32.totalorder %s135, %s136
    %p150 = scmp.eq.s32.totalorder %s23, 1
    %p151 = por %p149, %p150
    %p153 = scmp.ne.s32.totalorder %s136, %s152
    %p154 = scmp.eq.s32.totalorder %s23, 0
    %p155 = por %p153, %p154
    %s156 = ssub.s32 %s25, %s39
    %s157 = ssub.s32 %s26, %s35
    %s158 = sor.u32 %s156, %s157
    %p159 = scmp.eq.s32.totalorder %s158, 0
    %s161 = sadd.s32 %s160, 1
    %s162 = scalar_select %p159, %s160, %s161
    %p165 = pneg %p159
    %p166 = scmp.eq.s32.totalorder %s17, 1
    %p167 = por %p165, %p166
    %p168 = scmp.ne.s32.totalorder %s160, %s163
    %p169 = scmp.eq.s32.totalorder %s17, 0
    %p170 = por %p168, %p169
    %p171 = scmp.ne.s32.totalorder %s160, %s163
    %p172 = scmp.eq.s32.totalorder %s22, 1
    %p173 = por %p171, %p172
    %p174 = scmp.ne.s32.totalorder %s163, %s164
    %p175 = scmp.eq.s32.totalorder %s22, 0
    %p176 = por %p174, %p175
    %p177 = scmp.ne.s32.totalorder %s163, %s164
    %p178 = scmp.eq.s32.totalorder %s23, 1
    %p179 = por %p177, %p178
    %p181 = scmp.ne.s32.totalorder %s164, %s180
    %p182 = scmp.eq.s32.totalorder %s23, 0
    %p183 = por %p181, %p182
    %s184 = ssub.s32 %s25, %s39
    %s185 = ssub.s32 %s26, %s35
    %s186 = sor.u32 %s184, %s185
    %p187 = scmp.eq.s32.totalorder %s186, 0
    %s189 = sadd.s32 %s188, 1
    %s190 = scalar_select %p187, %s188, %s189
    %p193 = pneg %p187
    %p194 = scmp.eq.s32.totalorder %s17, 1
    %p195 = por %p193, %p194
    %p196 = scmp.ne.s32.totalorder %s188, %s191
    %p197 = scmp.eq.s32.totalorder %s17, 0
    %p198 = por %p196, %p197
    %p199 = scmp.ne.s32.totalorder %s188, %s191
    %p200 = scmp.eq.s32.totalorder %s22, 1
    %p201 = por %p199, %p200
    %p202 = scmp.ne.s32.totalorder %s191, %s192
    %p203 = scmp.eq.s32.totalorder %s22, 0
    %p204 = por %p202, %p203
    %p205 = scmp.ne.s32.totalorder %s191, %s192
    %p206 = scmp.eq.s32.totalorder %s23, 1
    %p207 = por %p205, %p206
    %p209 = scmp.ne.s32.totalorder %s192, %s208
    %p210 = scmp.eq.s32.totalorder %s23, 0
    %p211 = por %p209, %p210
    %s212 = sadd.s32 %s26, 1
    %s213 = smul.u32 %s212, 8
    %s214 = sadd.s32 %s35, 1
    %s215 = smul.u32 %s214, 8
    %s216 = ssub.s32 %s25, %s39
    %s217 = ssub.s32 %s213, %s215
    %s218 = sor.u32 %s216, %s217
    %p219 = scmp.eq.s32.totalorder %s218, 0
    %s221 = sadd.s32 %s220, 1
    %s222 = scalar_select %p219, %s220, %s221
    %p225 = pneg %p219
    %p226 = scmp.eq.s32.totalorder %s17, 1
    %p227 = por %p225, %p226
    %p228 = scmp.ne.s32.totalorder %s220, %s223
    %p229 = scmp.eq.s32.totalorder %s17, 0
    %p230 = por %p228, %p229
    %p231 = scmp.ne.s32.totalorder %s220, %s223
    %p232 = scmp.eq.s32.totalorder %s22, 1
    %p233 = por %p231, %p232
    %p234 = scmp.ne.s32.totalorder %s223, %s224
    %p235 = scmp.eq.s32.totalorder %s22, 0
    %p236 = por %p234, %p235
    %p237 = scmp.ne.s32.totalorder %s223, %s224
    %p238 = scmp.eq.s32.totalorder %s23, 1
    %p239 = por %p237, %p238
    %p241 = scmp.ne.s32.totalorder %s224, %s240
    %p242 = scmp.eq.s32.totalorder %s23, 0
    %p243 = por %p241, %p242
    %s244 = sadd.s32 %s26, 1
    %s245 = smul.u32 %s244, 8
    %s246 = sadd.s32 %s35, 1
    %s247 = smul.u32 %s246, 8
    %s248 = ssub.s32 %s25, %s39
    %s249 = ssub.s32 %s245, %s247
    %s250 = sor.u32 %s248, %s249
    %p251 = scmp.eq.s32.totalorder %s250, 0
    %s253 = sadd.s32 %s252, 1
    %s254 = scalar_select %p251, %s252, %s253
    %p257 = pneg %p251
    %p258 = scmp.eq.s32.totalorder %s17, 1
    %p259 = por %p257, %p258
    %p260 = scmp.ne.s32.totalorder %s252, %s255
    %p261 = scmp.eq.s32.totalorder %s17, 0
    %p262 = por %p260, %p261
    %p263 = scmp.ne.s32.totalorder %s252, %s255
    %p264 = scmp.eq.s32.totalorder %s22, 1
    %p265 = por %p263, %p264
    %p266 = scmp.ne.s32.totalorder %s255, %s256
    %p267 = scmp.eq.s32.totalorder %s22, 0
    %p268 = por %p266, %p267
    %p269 = scmp.ne.s32.totalorder %s255, %s256
    %p270 = scmp.eq.s32.totalorder %s23, 1
    %p271 = por %p269, %p270
    %p273 = scmp.ne.s32.totalorder %s256, %s272
    %p274 = scmp.eq.s32.totalorder %s23, 0
    %p275 = por %p273, %p274
    %s276 = sadd.s32 %s26, 1
    %s277 = smul.u32 %s276, 8
    %s278 = sadd.s32 %s35, 1
    %s279 = smul.u32 %s278, 8
    %s280 = ssub.s32 %s25, %s39
    %s281 = ssub.s32 %s277, %s279
    %s282 = sor.u32 %s280, %s281
    %p283 = scmp.eq.s32.totalorder %s282, 0
    %s285 = sadd.s32 %s284, 1
    %s286 = scalar_select %p283, %s284, %s285
    %p289 = pneg %p283
    %p290 = scmp.eq.s32.totalorder %s17, 1
    %p291 = por %p289, %p290
    %p292 = scmp.ne.s32.totalorder %s284, %s287
    %p293 = scmp.eq.s32.totalorder %s17, 0
    %p294 = por %p292, %p293
    %p295 = scmp.ne.s32.totalorder %s284, %s287
    %p296 = scmp.eq.s32.totalorder %s22, 1
    %p297 = por %p295, %p296
    %p298 = scmp.ne.s32.totalorder %s287, %s288
    %p299 = scmp.eq.s32.totalorder %s22, 0
    %p300 = por %p298, %p299
    %p301 = scmp.ne.s32.totalorder %s287, %s288
    %p302 = scmp.eq.s32.totalorder %s23, 1
    %p303 = por %p301, %p302
    %p305 = scmp.ne.s32.totalorder %s288, %s304
    %p306 = scmp.eq.s32.totalorder %s23, 0
    %p307 = por %p305, %p306
    %s308 = ssub.s32 %s24, %s43
    %p309 = scmp.eq.s32.totalorder %s308, 0
    %s311 = sadd.s32 %s310, 1
    %s312 = scalar_select %p309, %s310, %s311
    %p315 = pneg %p309
    %p316 = scmp.eq.s32.totalorder %s17, 1
    %p317 = por %p315, %p316
    %p318 = scmp.ne.s32.totalorder %s310, %s313
    %p319 = scmp.eq.s32.totalorder %s17, 0
    %p320 = por %p318, %p319
    %p321 = scmp.ne.s32.totalorder %s310, %s313
    %p322 = scmp.eq.s32.totalorder %s22, 1
    %p323 = por %p321, %p322
    %p324 = scmp.ne.s32.totalorder %s313, %s314
    %p325 = scmp.eq.s32.totalorder %s22, 0
    %p326 = por %p324, %p325
    %p327 = scmp.ne.s32.totalorder %s313, %s314
    %p328 = scmp.eq.s32.totalorder %s23, 1
    %p329 = por %p327, %p328
    %p331 = scmp.ne.s32.totalorder %s314, %s330
    %p332 = scmp.eq.s32.totalorder %s23, 0
    %p333 = por %p331, %p332
    %s334 = ssub.s32 %s24, %s43
    %p335 = scmp.eq.s32.totalorder %s334, 0
    %s337 = sadd.s32 %s336, 1
    %s338 = scalar_select %p335, %s336, %s337
    %p341 = pneg %p335
    %p342 = scmp.eq.s32.totalorder %s17, 1
    %p343 = por %p341, %p342
    %p344 = scmp.ne.s32.totalorder %s336, %s339
    %p345 = scmp.eq.s32.totalorder %s17, 0
    %p346 = por %p344, %p345
    %p347 = scmp.ne.s32.totalorder %s336, %s339
    %p348 = scmp.eq.s32.totalorder %s22, 1
    %p349 = por %p347, %p348
    %p350 = scmp.ne.s32.totalorder %s339, %s340
    %p351 = scmp.eq.s32.totalorder %s22, 0
    %p352 = por %p350, %p351
    %p353 = scmp.ne.s32.totalorder %s339, %s340
    %p354 = scmp.eq.s32.totalorder %s23, 1
    %p355 = por %p353, %p354
    %p357 = scmp.ne.s32.totalorder %s340, %s356
    %p358 = scmp.eq.s32.totalorder %s23, 0
    %p359 = por %p357, %p358
    %s360 = ssub.s32 %s25, %s39
    %s361 = ssub.s32 %s26, %s35
    %s362 = sor.u32 %s360, %s361
    %s363 = ssub.s32 %s24, %s43
    %s364 = sor.u32 %s362, %s363
    %p365 = scmp.eq.s32.totalorder %s364, 0
    %s367 = sadd.s32 %s366, 1
    %s368 = scalar_select %p365, %s366, %s367
    %p371 = pneg %p365
    %p372 = scmp.eq.s32.totalorder %s17, 1
    %p373 = por %p371, %p372
    %p374 = scmp.ne.s32.totalorder %s366, %s369
    %p375 = scmp.eq.s32.totalorder %s17, 0
    %p376 = por %p374, %p375
    %p377 = scmp.ne.s32.totalorder %s366, %s369
    %p378 = scmp.eq.s32.totalorder %s22, 1
    %p379 = por %p377, %p378
    %p380 = scmp.ne.s32.totalorder %s369, %s370
    %p381 = scmp.eq.s32.totalorder %s22, 0
    %p382 = por %p380, %p381
    %p383 = scmp.ne.s32.totalorder %s369, %s370
    %p384 = scmp.eq.s32.totalorder %s23, 1
    %p385 = por %p383, %p384
    %p387 = scmp.ne.s32.totalorder %s370, %s386
    %p388 = scmp.eq.s32.totalorder %s23, 0
    %p389 = por %p387, %p388
    %p390 = scmp.le.s32.totalorder 1, %s17
    %p391 = scmp.lt.s32.totalorder %s17, 3
    %p392 = pnand %p390, %p391
    %p393 = pneg %p392
    // Predicated region
    $region9: #{downsample_forward.1} parent=5 // pred_check
      _
    $region10: #{downsample_forward.1} parent=5 // pred_check_branch
      %395 = sbr.rel (%p392) target = $region12
    $region11: #{downsample_forward.1} parent=5 // pred_region
      %s396 = ssub.s32 %s17, 1
      // Predicated region
      $region13: #{downsample_forward.1} parent=11 // pred_check
        %p397 = pneg %p326
      $region14: #{downsample_forward.1} parent=11 // pred_check_branch
        %399 = sbr.rel (%p397) target = $region16
      $region15: #{downsample_forward.1} parent=11 // pred_region
        %p400 = scmp.lt.s32.totalorder %s27, 0
        %s401 = scalar_select %p400, %s27, 0
        %s402 = smul.addr %s401, 2
        %s403 = scalar_lea.vmem %s9, %s402
      $region16: #{downsample_forward.1} parent=11 // pred_fallthru
        _
      // Predicated region
      $region17: #{downsample_forward.1} parent=11 // pred_check
        %p404 = pneg %p352
      $region18: #{downsample_forward.1} parent=11 // pred_check_branch
        %406 = sbr.rel (%p404) target = $region20
      $region19: #{downsample_forward.1} parent=11 // pred_region
        %p407 = scmp.lt.s32.totalorder %s27, 0
        %s408 = scalar_select %p407, %s27, 0
        %s409 = scalar_lea.vmem %s10, %s408
      $region20: #{downsample_forward.1} parent=11 // pred_fallthru
        _
    $region12: #{downsample_forward.1} parent=5 // pred_fallthru
      _
    %p410 = scmp.lt.s32.totalorder %s17, 2
    // Predicated region
    $region21: #{downsample_forward.1} parent=5 // pred_check
      %p411 = pneg %p410
    $region22: #{downsample_forward.1} parent=5 // pred_check_branch
      %413 = sbr.rel (%p411) target = $region24
    $region23: #{downsample_forward.1} parent=5 // pred_region
      // Predicated region
      $region25: #{downsample_forward.1} parent=23 // pred_check
        %p414 = pneg %p58
      $region26: #{downsample_forward.1} parent=23 // pred_check_branch
        %416 = sbr.rel (%p414) target = $region28
      $region27: #{downsample_forward.1} parent=23 // pred_region
        %s417 = smul.u32 8, %s26
        %s418 = ssub.s32 9, %s417
        %p419 = scmp.lt.s32.totalorder %s418, 8
        %s420 = scalar_select %p419, %s418, 8
        %s421 = smul.u32 64, %s420
        %p422 = scmp.lt.s32.totalorder %s25, 1
        %s423 = scalar_select %p422, %s25, 1
        %p424 = scmp.lt.s32.totalorder %s417, 8
        %s425 = scalar_select %p424, %s417, 8
        %s426 = smul.addr %s423, 54
        %s427 = sadd.s32 %s425, %s426
        %s428 = smul.addr %s427, 4
        %s429 = scalar_lea.vmem %s0, %s428
        %s430 = smul.u32 8, %s26
        %s431 = ssub.s32 9, %s430
        %p432 = scmp.lt.s32.totalorder %s431, 8
        %s433 = scalar_select %p432, %s431, 8
        %s434 = smul.u32 64, %s433
      $region28: #{downsample_forward.1} parent=23 // pred_fallthru
        _
      // Predicated region
      $region29: #{downsample_forward.1} parent=23 // pred_check
        %p435 = pneg %p86
      $region30: #{downsample_forward.1} parent=23 // pred_check_branch
        %437 = sbr.rel (%p435) target = $region32
      $region31: #{downsample_forward.1} parent=23 // pred_region
        %s438 = smul.u32 8, %s26
        %s439 = ssub.s32 9, %s438
        %p440 = scmp.lt.s32.totalorder %s439, 8
        %s441 = scalar_select %p440, %s439, 8
        %s442 = smul.u32 64, %s441
        %p443 = scmp.lt.s32.totalorder %s25, 1
        %s444 = scalar_select %p443, %s25, 1
        %p445 = scmp.lt.s32.totalorder %s438, 8
        %s446 = scalar_select %p445, %s438, 8
        %s447 = sadd.s32 %s446, 9
        %s448 = smul.addr %s444, 54
        %s449 = sadd.s32 %s447, %s448
        %s450 = smul.addr %s449, 4
        %s451 = scalar_lea.vmem %s1, %s450
        %s452 = smul.u32 8, %s26
        %s453 = ssub.s32 9, %s452
        %p454 = scmp.lt.s32.totalorder %s453, 8
        %s455 = scalar_select %p454, %s453, 8
        %s456 = smul.u32 64, %s455
      $region32: #{downsample_forward.1} parent=23 // pred_fallthru
        _
      // Predicated region
      $region33: #{downsample_forward.1} parent=23 // pred_check
        %p457 = pneg %p114
      $region34: #{downsample_forward.1} parent=23 // pred_check_branch
        %459 = sbr.rel (%p457) target = $region36
      $region35: #{downsample_forward.1} parent=23 // pred_region
        %s460 = smul.u32 8, %s26
        %s461 = ssub.s32 9, %s460
        %p462 = scmp.lt.s32.totalorder %s461, 8
        %s463 = scalar_select %p462, %s461, 8
        %s464 = smul.u32 64, %s463
        %p465 = scmp.lt.s32.totalorder %s25, 1
        %s466 = scalar_select %p465, %s25, 1
        %p467 = scmp.lt.s32.totalorder %s460, 8
        %s468 = scalar_select %p467, %s460, 8
        %s469 = sadd.s32 %s468, 18
        %s470 = smul.addr %s466, 54
        %s471 = sadd.s32 %s469, %s470
        %s472 = smul.addr %s471, 4
        %s473 = scalar_lea.vmem %s2, %s472
        %s474 = smul.u32 8, %s26
        %s475 = ssub.s32 9, %s474
        %p476 = scmp.lt.s32.totalorder %s475, 8
        %s477 = scalar_select %p476, %s475, 8
        %s478 = smul.u32 64, %s477
      $region36: #{downsample_forward.1} parent=23 // pred_fallthru
        _
      // Predicated region
      $region37: #{downsample_forward.1} parent=23 // pred_check
        %p479 = pneg %p142
      $region38: #{downsample_forward.1} parent=23 // pred_check_branch
        %481 = sbr.rel (%p479) target = $region40
      $region39: #{downsample_forward.1} parent=23 // pred_region
        %s482 = smul.u32 8, %s26
        %s483 = ssub.s32 9, %s482
        %p484 = scmp.lt.s32.totalorder %s483, 8
        %s485 = scalar_select %p484, %s483, 8
        %s486 = smul.u32 64, %s485
        %p487 = scmp.lt.s32.totalorder %s25, 1
        %s488 = scalar_select %p487, %s25, 1
        %p489 = scmp.lt.s32.totalorder %s482, 8
        %s490 = scalar_select %p489, %s482, 8
        %s491 = sadd.s32 %s490, 27
        %s492 = smul.addr %s488, 54
        %s493 = sadd.s32 %s491, %s492
        %s494 = smul.addr %s493, 4
        %s495 = scalar_lea.vmem %s3, %s494
        %s496 = smul.u32 8, %s26
        %s497 = ssub.s32 9, %s496
        %p498 = scmp.lt.s32.totalorder %s497, 8
        %s499 = scalar_select %p498, %s497, 8
        %s500 = smul.u32 64, %s499
      $region40: #{downsample_forward.1} parent=23 // pred_fallthru
        _
      // Predicated region
      $region41: #{downsample_forward.1} parent=23 // pred_check
        %p501 = pneg %p170
      $region42: #{downsample_forward.1} parent=23 // pred_check_branch
        %503 = sbr.rel (%p501) target = $region44
      $region43: #{downsample_forward.1} parent=23 // pred_region
        %s504 = smul.u32 8, %s26
        %s505 = ssub.s32 9, %s504
        %p506 = scmp.lt.s32.totalorder %s505, 8
        %s507 = scalar_select %p506, %s505, 8
        %s508 = smul.u32 64, %s507
        %p509 = scmp.lt.s32.totalorder %s25, 1
        %s510 = scalar_select %p509, %s25, 1
        %p511 = scmp.lt.s32.totalorder %s504, 8
        %s512 = scalar_select %p511, %s504, 8
        %s513 = sadd.s32 %s512, 36
        %s514 = smul.addr %s510, 54
        %s515 = sadd.s32 %s513, %s514
        %s516 = smul.addr %s515, 4
        %s517 = scalar_lea.vmem %s4, %s516
        %s518 = smul.u32 8, %s26
        %s519 = ssub.s32 9, %s518
        %p520 = scmp.lt.s32.totalorder %s519, 8
        %s521 = scalar_select %p520, %s519, 8
        %s522 = smul.u32 64, %s521
      $region44: #{downsample_forward.1} parent=23 // pred_fallthru
        _
      // Predicated region
      $region45: #{downsample_forward.1} parent=23 // pred_check
        %p523 = pneg %p198
      $region46: #{downsample_forward.1} parent=23 // pred_check_branch
        %525 = sbr.rel (%p523) target = $region48
      $region47: #{downsample_forward.1} parent=23 // pred_region
        %s526 = smul.u32 8, %s26
        %s527 = ssub.s32 9, %s526
        %p528 = scmp.lt.s32.totalorder %s527, 8
        %s529 = scalar_select %p528, %s527, 8
        %s530 = smul.u32 64, %s529
        %p531 = scmp.lt.s32.totalorder %s25, 1
        %s532 = scalar_select %p531, %s25, 1
        %p533 = scmp.lt.s32.totalorder %s526, 8
        %s534 = scalar_select %p533, %s526, 8
        %s535 = sadd.s32 %s534, 45
        %s536 = smul.addr %s532, 54
        %s537 = sadd.s32 %s535, %s536
        %s538 = smul.addr %s537, 4
        %s539 = scalar_lea.vmem %s5, %s538
        %s540 = smul.u32 8, %s26
        %s541 = ssub.s32 9, %s540
        %p542 = scmp.lt.s32.totalorder %s541, 8
        %s543 = scalar_select %p542, %s541, 8
        %s544 = smul.u32 64, %s543
      $region48: #{downsample_forward.1} parent=23 // pred_fallthru
        _
      // Predicated region
      $region49: #{downsample_forward.1} parent=23 // pred_check
        %p545 = pneg %p230
      $region50: #{downsample_forward.1} parent=23 // pred_check_branch
        %547 = sbr.rel (%p545) target = $region52
      $region51: #{downsample_forward.1} parent=23 // pred_region
        %s548 = sadd.s32 %s26, 1
        %s549 = smul.u32 %s548, 8
        %p550 = scmp.lt.s32.totalorder %s25, 1
        %s551 = scalar_select %p550, %s25, 1
        %p552 = scmp.lt.s32.totalorder %s549, 8
        %s553 = scalar_select %p552, %s549, 8
        %s554 = smul.addr %s551, 54
        %s555 = sadd.s32 %s553, %s554
        %s556 = smul.addr %s555, 4
        %s557 = scalar_lea.vmem %s6, %s556
        %s558 = sadd.s32 %s26, 1
        %s559 = smul.u32 %s558, 8
      $region52: #{downsample_forward.1} parent=23 // pred_fallthru
        _
      // Predicated region
      $region53: #{downsample_forward.1} parent=23 // pred_check
        %p560 = pneg %p262
      $region54: #{downsample_forward.1} parent=23 // pred_check_branch
        %562 = sbr.rel (%p560) target = $region56
      $region55: #{downsample_forward.1} parent=23 // pred_region
        %s563 = sadd.s32 %s26, 1
        %s564 = smul.u32 %s563, 8
        %p565 = scmp.lt.s32.totalorder %s25, 1
        %s566 = scalar_select %p565, %s25, 1
        %p567 = scmp.lt.s32.totalorder %s564, 8
        %s568 = scalar_select %p567, %s564, 8
        %s569 = sadd.s32 %s568, 9
        %s570 = smul.addr %s566, 54
        %s571 = sadd.s32 %s569, %s570
        %s572 = smul.addr %s571, 4
        %s573 = scalar_lea.vmem %s7, %s572
        %s574 = sadd.s32 %s26, 1
        %s575 = smul.u32 %s574, 8
      $region56: #{downsample_forward.1} parent=23 // pred_fallthru
        _
      // Predicated region
      $region57: #{downsample_forward.1} parent=23 // pred_check
        %p576 = pneg %p294
      $region58: #{downsample_forward.1} parent=23 // pred_check_branch
        %578 = sbr.rel (%p576) target = $region60
      $region59: #{downsample_forward.1} parent=23 // pred_region
        %s579 = sadd.s32 %s26, 1
        %s580 = smul.u32 %s579, 8
        %p581 = scmp.lt.s32.totalorder %s25, 1
        %s582 = scalar_select %p581, %s25, 1
        %p583 = scmp.lt.s32.totalorder %s580, 8
        %s584 = scalar_select %p583, %s580, 8
        %s585 = sadd.s32 %s584, 18
        %s586 = smul.addr %s582, 54
        %s587 = sadd.s32 %s585, %s586
        %s588 = smul.addr %s587, 4
        %s589 = scalar_lea.vmem %s8, %s588
        %s590 = sadd.s32 %s26, 1
        %s591 = smul.u32 %s590, 8
      $region60: #{downsample_forward.1} parent=23 // pred_fallthru
        _
    $region24: #{downsample_forward.1} parent=5 // pred_fallthru
      _
    %p592 = scmp.le.s32.totalorder 1, %s17
    %p593 = scmp.lt.s32.totalorder %s17, 3
    %p594 = pnand %p592, %p593
    %p595 = pneg %p594
    // Predicated region
    $region61: #{downsample_forward.1} parent=5 // pred_check
      _
    $region62: #{downsample_forward.1} parent=5 // pred_check_branch
      %597 = sbr.rel (%p594) target = $region64
    $region63: #{downsample_forward.1} parent=5 // pred_region
      %s598 = ssub.s32 %s17, 1
      %s599 = smul.u32 8, %s29
      %s600 = ssub.s32 9, %s599
      %p601 = scmp.lt.s32.totalorder %s600, 8
      %s602 = scalar_select %p601, %s600, 8
      %s603 = smul.u32 64, %s602
      %p604 = scmp.lt.s32.totalorder %s28, 1
      %s605 = scalar_select %p604, %s28, 1
      %p606 = scmp.lt.s32.totalorder %s599, 8
      %s607 = scalar_select %p606, %s599, 8
      %s608 = smul.addr %s605, 54
      %s609 = sadd.s32 %s607, %s608
      %s610 = smul.addr %s609, 4
      %s611 = scalar_lea.vmem %s0, %s610
      %p612 = pneg %p64
      %p613 = pneg %p61
      %s614 = smul.u32 8, %s29
      %s615 = ssub.s32 9, %s614
      %p616 = scmp.lt.s32.totalorder %s615, 8
      %s617 = scalar_select %p616, %s615, 8
      %s618 = smul.u32 64, %s617
      %p619 = scmp.lt.s32.totalorder %s28, 1
      %s620 = scalar_select %p619, %s28, 1
      %p621 = scmp.lt.s32.totalorder %s614, 8
      %s622 = scalar_select %p621, %s614, 8
      %s623 = sadd.s32 %s622, 9
      %s624 = smul.addr %s620, 54
      %s625 = sadd.s32 %s623, %s624
      %s626 = smul.addr %s625, 4
      %s627 = scalar_lea.vmem %s1, %s626
      %p628 = pneg %p92
      %p629 = pneg %p89
      %s630 = smul.u32 8, %s29
      %s631 = ssub.s32 9, %s630
      %p632 = scmp.lt.s32.totalorder %s631, 8
      %s633 = scalar_select %p632, %s631, 8
      %s634 = smul.u32 64, %s633
      %p635 = scmp.lt.s32.totalorder %s28, 1
      %s636 = scalar_select %p635, %s28, 1
      %p637 = scmp.lt.s32.totalorder %s630, 8
      %s638 = scalar_select %p637, %s630, 8
      %s639 = sadd.s32 %s638, 18
      %s640 = smul.addr %s636, 54
      %s641 = sadd.s32 %s639, %s640
      %s642 = smul.addr %s641, 4
      %s643 = scalar_lea.vmem %s2, %s642
      %p644 = pneg %p120
      %p645 = pneg %p117
      %s646 = smul.u32 8, %s29
      %s647 = ssub.s32 9, %s646
      %p648 = scmp.lt.s32.totalorder %s647, 8
      %s649 = scalar_select %p648, %s647, 8
      %s650 = smul.u32 64, %s649
      %p651 = scmp.lt.s32.totalorder %s28, 1
      %s652 = scalar_select %p651, %s28, 1
      %p653 = scmp.lt.s32.totalorder %s646, 8
      %s654 = scalar_select %p653, %s646, 8
      %s655 = sadd.s32 %s654, 27
      %s656 = smul.addr %s652, 54
      %s657 = sadd.s32 %s655, %s656
      %s658 = smul.addr %s657, 4
      %s659 = scalar_lea.vmem %s3, %s658
      %p660 = pneg %p148
      %p661 = pneg %p145
      %s662 = smul.u32 8, %s29
      %s663 = ssub.s32 9, %s662
      %p664 = scmp.lt.s32.totalorder %s663, 8
      %s665 = scalar_select %p664, %s663, 8
      %s666 = smul.u32 64, %s665
      %p667 = scmp.lt.s32.totalorder %s28, 1
      %s668 = scalar_select %p667, %s28, 1
      %p669 = scmp.lt.s32.totalorder %s662, 8
      %s670 = scalar_select %p669, %s662, 8
      %s671 = sadd.s32 %s670, 36
      %s672 = smul.addr %s668, 54
      %s673 = sadd.s32 %s671, %s672
      %s674 = smul.addr %s673, 4
      %s675 = scalar_lea.vmem %s4, %s674
      %p676 = pneg %p176
      %p677 = pneg %p173
      %s678 = smul.u32 8, %s29
      %s679 = ssub.s32 9, %s678
      %p680 = scmp.lt.s32.totalorder %s679, 8
      %s681 = scalar_select %p680, %s679, 8
      %s682 = smul.u32 64, %s681
      %p683 = scmp.lt.s32.totalorder %s28, 1
      %s684 = scalar_select %p683, %s28, 1
      %p685 = scmp.lt.s32.totalorder %s678, 8
      %s686 = scalar_select %p685, %s678, 8
      %s687 = sadd.s32 %s686, 45
      %s688 = smul.addr %s684, 54
      %s689 = sadd.s32 %s687, %s688
      %s690 = smul.addr %s689, 4
      %s691 = scalar_lea.vmem %s5, %s690
      %p692 = pneg %p204
      %p693 = pneg %p201
      %s694 = sadd.s32 %s29, 1
      %s695 = smul.u32 %s694, 8
      %p696 = scmp.lt.s32.totalorder %s28, 1
      %s697 = scalar_select %p696, %s28, 1
      %p698 = scmp.lt.s32.totalorder %s695, 8
      %s699 = scalar_select %p698, %s695, 8
      %s700 = smul.addr %s697, 54
      %s701 = sadd.s32 %s699, %s700
      %s702 = smul.addr %s701, 4
      %s703 = scalar_lea.vmem %s6, %s702
      %p704 = pneg %p236
      %p705 = pneg %p233
      %s706 = sadd.s32 %s29, 1
      %s707 = smul.u32 %s706, 8
      %p708 = scmp.lt.s32.totalorder %s28, 1
      %s709 = scalar_select %p708, %s28, 1
      %p710 = scmp.lt.s32.totalorder %s707, 8
      %s711 = scalar_select %p710, %s707, 8
      %s712 = sadd.s32 %s711, 9
      %s713 = smul.addr %s709, 54
      %s714 = sadd.s32 %s712, %s713
      %s715 = smul.addr %s714, 4
      %s716 = scalar_lea.vmem %s7, %s715
      %p717 = pneg %p268
      %p718 = pneg %p265
      %s719 = sadd.s32 %s29, 1
      %s720 = smul.u32 %s719, 8
      %p721 = scmp.lt.s32.totalorder %s28, 1
      %s722 = scalar_select %p721, %s28, 1
      %p723 = scmp.lt.s32.totalorder %s720, 8
      %s724 = scalar_select %p723, %s720, 8
      %s725 = sadd.s32 %s724, 18
      %s726 = smul.addr %s722, 54
      %s727 = sadd.s32 %s725, %s726
      %s728 = smul.addr %s727, 4
      %s729 = scalar_lea.vmem %s8, %s728
      %p730 = pneg %p300
      %p731 = pneg %p297
      %p732 = scmp.lt.s32.totalorder %s27, 0
      %s733 = scalar_select %p732, %s27, 0
      %s734 = smul.addr %s733, 2
      %s735 = scalar_lea.vmem %s9, %s734
      %p736 = pneg %p326
      %p737 = pneg %p323
      %p738 = scmp.lt.s32.totalorder %s27, 0
      %s739 = scalar_select %p738, %s27, 0
      %s740 = scalar_lea.vmem %s10, %s739
      %p741 = pneg %p352
      %p742 = pneg %p349
      %p743 = pneg %p382
      %p744 = pneg %p379
      %s745 = smul.u32 8, %s29
      %p746 = scmp.lt.s32.totalorder %s28, 1
      %s747 = scalar_select %p746, %s28, 1
      %p748 = scmp.lt.s32.totalorder %s745, 7
      %s749 = scalar_select %p748, %s745, 7
      %p750 = scmp.lt.s32.totalorder %s27, 0
      %s751 = scalar_select %p750, %s27, 0
      %s752 = sadd.s32 %s751, %s749
      %s753 = smul.addr %s747, 8
      %s754 = sadd.s32 %s752, %s753
      %s755 = smul.addr %s754, 8
      %s756 = scalar_lea.vmem %s11, %s755
      %s757 = smul.u32 8, %s29
      %s758 = ssub.s32 9, %s757
      %p759 = scmp.lt.s32.totalorder %s758, 8
      %s760 = scalar_select %p759, %s758, 8
      %s761 = smul.u32 64, %s760
      %p762 = scmp.lt.s32.totalorder %s28, 1
      %s763 = scalar_select %p762, %s28, 1
      %p764 = scmp.lt.s32.totalorder %s757, 8
      %s765 = scalar_select %p764, %s757, 8
      %s766 = smul.addr %s763, 54
      %s767 = sadd.s32 %s765, %s766
      %s768 = smul.addr %s767, 4
      %s769 = scalar_lea.vmem %s0, %s768
      %s770 = smul.u32 8, %s29
      %s771 = ssub.s32 9, %s770
      %p772 = scmp.lt.s32.totalorder %s771, 8
      %s773 = scalar_select %p772, %s771, 8
      %s774 = smul.u32 64, %s773
      %s775 = smul.u32 8, %s29
      %s776 = ssub.s32 9, %s775
      %p777 = scmp.lt.s32.totalorder %s776, 8
      %s778 = scalar_select %p777, %s776, 8
      %s779 = smul.u32 64, %s778
      %p780 = scmp.lt.s32.totalorder %s28, 1
      %s781 = scalar_select %p780, %s28, 1
      %p782 = scmp.lt.s32.totalorder %s775, 8
      %s783 = scalar_select %p782, %s775, 8
      %s784 = sadd.s32 %s783, 9
      %s785 = smul.addr %s781, 54
      %s786 = sadd.s32 %s784, %s785
      %s787 = smul.addr %s786, 4
      %s788 = scalar_lea.vmem %s1, %s787
      %s789 = smul.u32 8, %s29
      %s790 = ssub.s32 9, %s789
      %p791 = scmp.lt.s32.totalorder %s790, 8
      %s792 = scalar_select %p791, %s790, 8
      %s793 = smul.u32 64, %s792
      %s794 = smul.u32 8, %s29
      %s795 = ssub.s32 9, %s794
      %p796 = scmp.lt.s32.totalorder %s795, 8
      %s797 = scalar_select %p796, %s795, 8
      %s798 = smul.u32 64, %s797
      %p799 = scmp.lt.s32.totalorder %s28, 1
      %s800 = scalar_select %p799, %s28, 1
      %p801 = scmp.lt.s32.totalorder %s794, 8
      %s802 = scalar_select %p801, %s794, 8
      %s803 = sadd.s32 %s802, 18
      %s804 = smul.addr %s800, 54
      %s805 = sadd.s32 %s803, %s804
      %s806 = smul.addr %s805, 4
      %s807 = scalar_lea.vmem %s2, %s806
      %s808 = smul.u32 8, %s29
      %s809 = ssub.s32 9, %s808
      %p810 = scmp.lt.s32.totalorder %s809, 8
      %s811 = scalar_select %p810, %s809, 8
      %s812 = smul.u32 64, %s811
      %s813 = smul.u32 8, %s29
      %s814 = ssub.s32 9, %s813
      %p815 = scmp.lt.s32.totalorder %s814, 8
      %s816 = scalar_select %p815, %s814, 8
      %s817 = smul.u32 64, %s816
      %p818 = scmp.lt.s32.totalorder %s28, 1
      %s819 = scalar_select %p818, %s28, 1
      %p820 = scmp.lt.s32.totalorder %s813, 8
      %s821 = scalar_select %p820, %s813, 8
      %s822 = sadd.s32 %s821, 27
      %s823 = smul.addr %s819, 54
      %s824 = sadd.s32 %s822, %s823
      %s825 = smul.addr %s824, 4
      %s826 = scalar_lea.vmem %s3, %s825
      %s827 = smul.u32 8, %s29
      %s828 = ssub.s32 9, %s827
      %p829 = scmp.lt.s32.totalorder %s828, 8
      %s830 = scalar_select %p829, %s828, 8
      %s831 = smul.u32 64, %s830
      %s832 = smul.u32 8, %s29
      %s833 = ssub.s32 9, %s832
      %p834 = scmp.lt.s32.totalorder %s833, 8
      %s835 = scalar_select %p834, %s833, 8
      %s836 = smul.u32 64, %s835
      %p837 = scmp.lt.s32.totalorder %s28, 1
      %s838 = scalar_select %p837, %s28, 1
      %p839 = scmp.lt.s32.totalorder %s832, 8
      %s840 = scalar_select %p839, %s832, 8
      %s841 = sadd.s32 %s840, 36
      %s842 = smul.addr %s838, 54
      %s843 = sadd.s32 %s841, %s842
      %s844 = smul.addr %s843, 4
      %s845 = scalar_lea.vmem %s4, %s844
      %s846 = smul.u32 8, %s29
      %s847 = ssub.s32 9, %s846
      %p848 = scmp.lt.s32.totalorder %s847, 8
      %s849 = scalar_select %p848, %s847, 8
      %s850 = smul.u32 64, %s849
      %s851 = smul.u32 8, %s29
      %s852 = ssub.s32 9, %s851
      %p853 = scmp.lt.s32.totalorder %s852, 8
      %s854 = scalar_select %p853, %s852, 8
      %s855 = smul.u32 64, %s854
      %p856 = scmp.lt.s32.totalorder %s28, 1
      %s857 = scalar_select %p856, %s28, 1
      %p858 = scmp.lt.s32.totalorder %s851, 8
      %s859 = scalar_select %p858, %s851, 8
      %s860 = sadd.s32 %s859, 45
      %s861 = smul.addr %s857, 54
      %s862 = sadd.s32 %s860, %s861
      %s863 = smul.addr %s862, 4
      %s864 = scalar_lea.vmem %s5, %s863
      %s865 = smul.u32 8, %s29
      %s866 = ssub.s32 9, %s865
      %p867 = scmp.lt.s32.totalorder %s866, 8
      %s868 = scalar_select %p867, %s866, 8
      %s869 = smul.u32 64, %s868
      %s870 = sadd.s32 %s29, 1
      %s871 = smul.u32 %s870, 8
      %p872 = scmp.lt.s32.totalorder %s28, 1
      %s873 = scalar_select %p872, %s28, 1
      %p874 = scmp.lt.s32.totalorder %s871, 8
      %s875 = scalar_select %p874, %s871, 8
      %s876 = smul.addr %s873, 54
      %s877 = sadd.s32 %s875, %s876
      %s878 = smul.addr %s877, 4
      %s879 = scalar_lea.vmem %s6, %s878
      %s880 = sadd.s32 %s29, 1
      %s881 = smul.u32 %s880, 8
      %s882 = sadd.s32 %s29, 1
      %s883 = smul.u32 %s882, 8
      %p884 = scmp.lt.s32.totalorder %s28, 1
      %s885 = scalar_select %p884, %s28, 1
      %p886 = scmp.lt.s32.totalorder %s883, 8
      %s887 = scalar_select %p886, %s883, 8
      %s888 = sadd.s32 %s887, 9
      %s889 = smul.addr %s885, 54
      %s890 = sadd.s32 %s888, %s889
      %s891 = smul.addr %s890, 4
      %s892 = scalar_lea.vmem %s7, %s891
      %s893 = sadd.s32 %s29, 1
      %s894 = smul.u32 %s893, 8
      %s895 = sadd.s32 %s29, 1
      %s896 = smul.u32 %s895, 8
      %p897 = scmp.lt.s32.totalorder %s28, 1
      %s898 = scalar_select %p897, %s28, 1
      %p899 = scmp.lt.s32.totalorder %s896, 8
      %s900 = scalar_select %p899, %s896, 8
      %s901 = sadd.s32 %s900, 18
      %s902 = smul.addr %s898, 54
      %s903 = sadd.s32 %s901, %s902
      %s904 = smul.addr %s903, 4
      %s905 = scalar_lea.vmem %s8, %s904
      %s906 = sadd.s32 %s29, 1
      %s907 = smul.u32 %s906, 8
      %p908 = scmp.lt.s32.totalorder %s27, 0
      %s909 = scalar_select %p908, %s27, 0
      %s910 = smul.addr %s909, 2
      %s911 = scalar_lea.vmem %s9, %s910
      %p912 = scmp.lt.s32.totalorder %s27, 0
      %s913 = scalar_select %p912, %s27, 0
      %s914 = scalar_lea.vmem %s10, %s913
      %s915 = smul.u32 8, %s29
      %p916 = scmp.lt.s32.totalorder %s28, 1
      %s917 = scalar_select %p916, %s28, 1
      %p918 = scmp.lt.s32.totalorder %s915, 7
      %s919 = scalar_select %p918, %s915, 7
      %p920 = scmp.lt.s32.totalorder %s27, 0
      %s921 = scalar_select %p920, %s27, 0
      %s922 = sadd.s32 %s921, %s919
      %s923 = smul.addr %s917, 8
      %s924 = sadd.s32 %s922, %s923
      %s925 = smul.addr %s924, 8
      %s926 = scalar_lea.vmem %s11, %s925
      %s927 = smul.u32 8, %s29
      %v929 = vld [vmem:[%s769] sm:$0xf]
      %v930 = vld [vmem:[%s769 + $0x4] sm:$0xf]
      %v931 = vld [vmem:[%s769 + $0x8] sm:$0xf]
      %v932 = vld [vmem:[%s769 + $0xc] sm:$0xf]
      %v933 = vld [vmem:[%s769 + $0x10] sm:$0xf]
      %v934 = vld [vmem:[%s769 + $0x14] sm:$0xf]
      %v935 = vld [vmem:[%s769 + $0x18] sm:$0xf]
      %v936 = vld [vmem:[%s769 + $0x1c] sm:$0xf]
      %v937 = vld [vmem:[%s911] sm:$0x3]
      %v938 = vld [vmem:[%s788] sm:$0xf]
      %v939 = vld [vmem:[%s788 + $0x4] sm:$0xf]
      %v940 = vld [vmem:[%s788 + $0x8] sm:$0xf]
      %v941 = vld [vmem:[%s788 + $0xc] sm:$0xf]
      %v942 = vld [vmem:[%s788 + $0x10] sm:$0xf]
      %v943 = vld [vmem:[%s788 + $0x14] sm:$0xf]
      %v944 = vld [vmem:[%s788 + $0x18] sm:$0xf]
      %v945 = vld [vmem:[%s788 + $0x1c] sm:$0xf]
      %s946 = scalar_lea.vmem %s911, 2
      %v947 = vld [vmem:[%s946] sm:$0x3]
      %v956 = vunpack.c.l.b16 %v938
      %v957 = vunpack.c.l.b16 %v939
      %v958 = vunpack.c.l.b16 %v940
      %v959 = vunpack.c.l.b16 %v941
      %v960 = vunpack.c.l.b16 %v942
      %v961 = vunpack.c.l.b16 %v943
      %v962 = vunpack.c.l.b16 %v944
      %v963 = vunpack.c.l.b16 %v945
      %v964 = vpack.c.b16 %v957, %v956
      %v965 = vpack.c.b16 %v959, %v958
      %v966 = vpack.c.b16 %v961, %v960
      %v967 = vpack.c.b16 %v963, %v962
      %vm968 = vcmask 31744
      %v970 = vsel %vm968, %v964, 0
      %v973 = vsel %vm968, %v965, 0
      %v976 = vsel %vm968, %v966, 0
      %v979 = vsel %vm968, %v967, 0
      %vm981 = vcmask 1041408
      %v983 = vsel %vm981, %v947, 0
      %985 = vmatprep.subr.bf16.mxu0 0
      %986 = vmatpush1.bf16.msra.mxu0 0
      %987 = vmatprep.subr.bf16.mxu0 0
      %988 = vmatpush1.bf16.msra.mxu0 0
      %989 = vmatprep.subr.bf16.mxu0 0
      %990 = vmatpush1.bf16.msra.mxu0 0
      %991 = vmatprep.subr.bf16.mxu0 0
      %992 = vmatpush1.bf16.msra.mxu0 0
      %993 = vmatprep.subr.bf16.mxu0 0
      %994 = vmatpush1.bf16.msra.mxu0 0
      %995 = vmatprep.subr.bf16.mxu0 0
      %996 = vmatpush1.bf16.msra.mxu0 0
      %997 = vmatprep.subr.bf16.mxu0 0
      %998 = vmatpush1.bf16.msra.mxu0 0
      %999 = vmatprep.subr.bf16.mxu0 0
      %1000 = vmatpush1.bf16.msra.mxu0 %v983
      %1001 = vmatprep.subr.bf16.mxu0 0
      %1002 = vmatpush2.bf16.msra.mxu0 0
      %1003 = vmatprep.subr.bf16.mxu0 0
      %1004 = vmatpush2.bf16.msra.mxu0 0
      %1005 = vmatprep.subr.bf16.mxu0 0
      %1006 = vmatpush2.bf16.msra.mxu0 0
      %1007 = vmatprep.subr.bf16.mxu0 0
      %1008 = vmatpush2.bf16.msra.mxu0 0
      %1009 = vmatprep.subr.bf16.mxu0 0
      %1010 = vmatpush2.bf16.msra.mxu0 0
      %1011 = vmatprep.subr.bf16.mxu0 0
      %1012 = vmatpush2.bf16.msra.mxu0 0
      %1013 = vmatprep.subr.bf16.mxu0 0
      %1014 = vmatpush2.bf16.msra.mxu0 0
      %1015 = vmatprep.subr.bf16.mxu0 0
      %1016 = vmatpush2.bf16.msra.mxu0 0
      %1017 = vmatprep.mubr.bf16.mxu0 0
      %1018 = vmatmul.mubr.bf16.gmra.mxu0 %v970
      %v1019 = vpop.f32.mrf.mxu0
      %v1020 = vadd.f32 0.0, %v1019
      %v1021 = vpop.f32.mrf.mxu0
      %v1022 = vpop.f32.mrf.mxu0
      %v1023 = vadd.f32 0.0, %v1022
      %v1024 = vpop.f32.mrf.mxu0
      %1025 = vmatprep.mubr.bf16.mxu0 0
      %1026 = vmatmul.mubr.bf16.gmra.mxu0 %v973
      %v1027 = vpop.f32.mrf.mxu0
      %v1028 = vadd.f32 0.0, %v1027
      %v1029 = vpop.f32.mrf.mxu0
      %v1030 = vpop.f32.mrf.mxu0
      %v1031 = vadd.f32 0.0, %v1030
      %v1032 = vpop.f32.mrf.mxu0
      %1033 = vmatprep.mubr.bf16.mxu0 0
      %1034 = vmatmul.mubr.bf16.gmra.mxu0 %v976
      %v1035 = vpop.f32.mrf.mxu0
      %v1036 = vadd.f32 0.0, %v1035
      %v1037 = vpop.f32.mrf.mxu0
      %v1038 = vpop.f32.mrf.mxu0
      %v1039 = vadd.f32 0.0, %v1038
      %v1040 = vpop.f32.mrf.mxu0
      %1041 = vmatprep.mubr.bf16.mxu0 0
      %1042 = vmatmul.mubr.bf16.gmra.mxu0 %v979
      %v1043 = vpop.f32.mrf.mxu0
      %v1044 = vadd.f32 0.0, %v1043
      %v1045 = vpop.f32.mrf.mxu0
      %v1046 = vpop.f32.mrf.mxu0
      %v1047 = vadd.f32 0.0, %v1046
      %v1048 = vpop.f32.mrf.mxu0
      %1049 = vdwg.mxu0
      %v1058 = vunpack.c.l.b16 %v929
      %v1059 = vunpack.c.l.b16 %v930
      %v1060 = vunpack.c.l.b16 %v931
      %v1061 = vunpack.c.l.b16 %v932
      %v1062 = vunpack.c.l.b16 %v933
      %v1063 = vunpack.c.l.b16 %v934
      %v1064 = vunpack.c.l.b16 %v935
      %v1065 = vunpack.c.l.b16 %v936
      %v1066 = vpack.c.b16 %v1059, %v1058
      %v1067 = vpack.c.b16 %v1061, %v1060
      %v1068 = vpack.c.b16 %v1063, %v1062
      %v1069 = vpack.c.b16 %v1065, %v1064
      %v1071 = vsel %vm968, %v1066, 0
      %v1074 = vsel %vm968, %v1067, 0
      %v1077 = vsel %vm968, %v1068, 0
      %v1080 = vsel %vm968, %v1069, 0
      %v1083 = vsel %vm981, %v937, 0
      %1085 = vmatprep.subr.bf16.mxu0 0
      %1086 = vmatpush1.bf16.msra.mxu0 0
      %1087 = vmatprep.subr.bf16.mxu0 0
      %1088 = vmatpush1.bf16.msra.mxu0 0
      %1089 = vmatprep.subr.bf16.mxu0 0
      %1090 = vmatpush1.bf16.msra.mxu0 0
      %1091 = vmatprep.subr.bf16.mxu0 0
      %1092 = vmatpush1.bf16.msra.mxu0 0
      %1093 = vmatprep.subr.bf16.mxu0 0
      %1094 = vmatpush1.bf16.msra.mxu0 0
      %1095 = vmatprep.subr.bf16.mxu0 0
      %1096 = vmatpush1.bf16.msra.mxu0 0
      %1097 = vmatprep.subr.bf16.mxu0 0
      %1098 = vmatpush1.bf16.msra.mxu0 0
      %1099 = vmatprep.subr.bf16.mxu0 0
      %1100 = vmatpush1.bf16.msra.mxu0 %v1083
      %1101 = vmatprep.subr.bf16.mxu0 0
      %1102 = vmatpush2.bf16.msra.mxu0 0
      %1103 = vmatprep.subr.bf16.mxu0 0
      %1104 = vmatpush2.bf16.msra.mxu0 0
      %1105 = vmatprep.subr.bf16.mxu0 0
      %1106 = vmatpush2.bf16.msra.mxu0 0
      %1107 = vmatprep.subr.bf16.mxu0 0
      %1108 = vmatpush2.bf16.msra.mxu0 0
      %1109 = vmatprep.subr.bf16.mxu0 0
      %1110 = vmatpush2.bf16.msra.mxu0 0
      %1111 = vmatprep.subr.bf16.mxu0 0
      %1112 = vmatpush2.bf16.msra.mxu0 0
      %1113 = vmatprep.subr.bf16.mxu0 0
      %1114 = vmatpush2.bf16.msra.mxu0 0
      %1115 = vmatprep.subr.bf16.mxu0 0
      %1116 = vmatpush2.bf16.msra.mxu0 0
      %1117 = vmatprep.mubr.bf16.mxu0 0
      %1118 = vmatmul.mubr.bf16.gmra.mxu0 %v1071
      %v1119 = vpop.f32.mrf.mxu0
      %v1120 = vadd.f32 %v1020, %v1119
      %v1121 = vpop.f32.mrf.mxu0
      %v1122 = vpop.f32.mrf.mxu0
      %v1123 = vadd.f32 %v1023, %v1122
      %v1124 = vpop.f32.mrf.mxu0
      %1125 = vmatprep.mubr.bf16.mxu0 0
      %1126 = vmatmul.mubr.bf16.gmra.mxu0 %v1074
      %v1127 = vpop.f32.mrf.mxu0
      %v1128 = vadd.f32 %v1028, %v1127
      %v1129 = vpop.f32.mrf.mxu0
      %v1130 = vpop.f32.mrf.mxu0
      %v1131 = vadd.f32 %v1031, %v1130
      %v1132 = vpop.f32.mrf.mxu0
      %1133 = vmatprep.mubr.bf16.mxu0 0
      %1134 = vmatmul.mubr.bf16.gmra.mxu0 %v1077
      %v1135 = vpop.f32.mrf.mxu0
      %v1136 = vadd.f32 %v1036, %v1135
      %v1137 = vpop.f32.mrf.mxu0
      %v1138 = vpop.f32.mrf.mxu0
      %v1139 = vadd.f32 %v1039, %v1138
      %v1140 = vpop.f32.mrf.mxu0
      %1141 = vmatprep.mubr.bf16.mxu0 0
      %1142 = vmatmul.mubr.bf16.gmra.mxu0 %v1080
      %v1143 = vpop.f32.mrf.mxu0
      %v1144 = vadd.f32 %v1044, %v1143
      %v1145 = vpop.f32.mrf.mxu0
      %v1146 = vpop.f32.mrf.mxu0
      %v1147 = vadd.f32 %v1047, %v1146
      %v1148 = vpop.f32.mrf.mxu0
      %1149 = vdwg.mxu0
      %v1150 = vld [vmem:[%s807] sm:$0xf]
      %v1151 = vld [vmem:[%s807 + $0x4] sm:$0xf]
      %v1152 = vld [vmem:[%s807 + $0x8] sm:$0xf]
      %v1153 = vld [vmem:[%s807 + $0xc] sm:$0xf]
      %v1154 = vld [vmem:[%s807 + $0x10] sm:$0xf]
      %v1155 = vld [vmem:[%s807 + $0x14] sm:$0xf]
      %v1156 = vld [vmem:[%s807 + $0x18] sm:$0xf]
      %v1157 = vld [vmem:[%s807 + $0x1c] sm:$0xf]
      %s1158 = scalar_lea.vmem %s911, 4
      %v1159 = vld [vmem:[%s1158] sm:$0x3]
      %v1168 = vunpack.c.l.b16 %v1150
      %v1169 = vunpack.c.l.b16 %v1151
      %v1170 = vunpack.c.l.b16 %v1152
      %v1171 = vunpack.c.l.b16 %v1153
      %v1172 = vunpack.c.l.b16 %v1154
      %v1173 = vunpack.c.l.b16 %v1155
      %v1174 = vunpack.c.l.b16 %v1156
      %v1175 = vunpack.c.l.b16 %v1157
      %v1176 = vpack.c.b16 %v1169, %v1168
      %v1177 = vpack.c.b16 %v1171, %v1170
      %v1178 = vpack.c.b16 %v1173, %v1172
      %v1179 = vpack.c.b16 %v1175, %v1174
      %v1181 = vsel %vm968, %v1176, 0
      %v1184 = vsel %vm968, %v1177, 0
      %v1187 = vsel %vm968, %v1178, 0
      %v1190 = vsel %vm968, %v1179, 0
      %v1193 = vsel %vm981, %v1159, 0
      %1195 = vmatprep.subr.bf16.mxu0 0
      %1196 = vmatpush1.bf16.msra.mxu0 0
      %1197 = vmatprep.subr.bf16.mxu0 0
      %1198 = vmatpush1.bf16.msra.mxu0 0
      %1199 = vmatprep.subr.bf16.mxu0 0
      %1200 = vmatpush1.bf16.msra.mxu0 0
      %1201 = vmatprep.subr.bf16.mxu0 0
      %1202 = vmatpush1.bf16.msra.mxu0 0
      %1203 = vmatprep.subr.bf16.mxu0 0
      %1204 = vmatpush1.bf16.msra.mxu0 0
      %1205 = vmatprep.subr.bf16.mxu0 0
      %1206 = vmatpush1.bf16.msra.mxu0 0
      %1207 = vmatprep.subr.bf16.mxu0 0
      %1208 = vmatpush1.bf16.msra.mxu0 0
      %1209 = vmatprep.subr.bf16.mxu0 0
      %1210 = vmatpush1.bf16.msra.mxu0 %v1193
      %1211 = vmatprep.subr.bf16.mxu0 0
      %1212 = vmatpush2.bf16.msra.mxu0 0
      %1213 = vmatprep.subr.bf16.mxu0 0
      %1214 = vmatpush2.bf16.msra.mxu0 0
      %1215 = vmatprep.subr.bf16.mxu0 0
      %1216 = vmatpush2.bf16.msra.mxu0 0
      %1217 = vmatprep.subr.bf16.mxu0 0
      %1218 = vmatpush2.bf16.msra.mxu0 0
      %1219 = vmatprep.subr.bf16.mxu0 0
      %1220 = vmatpush2.bf16.msra.mxu0 0
      %1221 = vmatprep.subr.bf16.mxu0 0
      %1222 = vmatpush2.bf16.msra.mxu0 0
      %1223 = vmatprep.subr.bf16.mxu0 0
      %1224 = vmatpush2.bf16.msra.mxu0 0
      %1225 = vmatprep.subr.bf16.mxu0 0
      %1226 = vmatpush2.bf16.msra.mxu0 0
      %1227 = vmatprep.mubr.bf16.mxu0 0
      %1228 = vmatmul.mubr.bf16.gmra.mxu0 %v1181
      %v1229 = vpop.f32.mrf.mxu0
      %v1230 = vadd.f32 0.0, %v1229
      %v1231 = vpop.f32.mrf.mxu0
      %v1232 = vpop.f32.mrf.mxu0
      %v1233 = vadd.f32 0.0, %v1232
      %v1234 = vpop.f32.mrf.mxu0
      %1235 = vmatprep.mubr.bf16.mxu0 0
      %1236 = vmatmul.mubr.bf16.gmra.mxu0 %v1184
      %v1237 = vpop.f32.mrf.mxu0
      %v1238 = vadd.f32 0.0, %v1237
      %v1239 = vpop.f32.mrf.mxu0
      %v1240 = vpop.f32.mrf.mxu0
      %v1241 = vadd.f32 0.0, %v1240
      %v1242 = vpop.f32.mrf.mxu0
      %1243 = vmatprep.mubr.bf16.mxu0 0
      %1244 = vmatmul.mubr.bf16.gmra.mxu0 %v1187
      %v1245 = vpop.f32.mrf.mxu0
      %v1246 = vadd.f32 0.0, %v1245
      %v1247 = vpop.f32.mrf.mxu0
      %v1248 = vpop.f32.mrf.mxu0
      %v1249 = vadd.f32 0.0, %v1248
      %v1250 = vpop.f32.mrf.mxu0
      %1251 = vmatprep.mubr.bf16.mxu0 0
      %1252 = vmatmul.mubr.bf16.gmra.mxu0 %v1190
      %v1253 = vpop.f32.mrf.mxu0
      %v1254 = vadd.f32 0.0, %v1253
      %v1255 = vpop.f32.mrf.mxu0
      %v1256 = vpop.f32.mrf.mxu0
      %v1257 = vadd.f32 0.0, %v1256
      %v1258 = vpop.f32.mrf.mxu0
      %1259 = vdwg.mxu0
      %v1260 = vadd.f32 %v1120, %v1230
      %v1261 = vadd.f32 %v1123, %v1233
      %v1262 = vadd.f32 %v1128, %v1238
      %v1263 = vadd.f32 %v1131, %v1241
      %v1264 = vadd.f32 %v1136, %v1246
      %v1265 = vadd.f32 %v1139, %v1249
      %v1266 = vadd.f32 %v1144, %v1254
      %v1267 = vadd.f32 %v1147, %v1257
      %v1268 = vld [vmem:[%s826] sm:$0xf]
      %v1269 = vld [vmem:[%s826 + $0x4] sm:$0xf]
      %v1270 = vld [vmem:[%s826 + $0x8] sm:$0xf]
      %v1271 = vld [vmem:[%s826 + $0xc] sm:$0xf]
      %v1272 = vld [vmem:[%s826 + $0x10] sm:$0xf]
      %v1273 = vld [vmem:[%s826 + $0x14] sm:$0xf]
      %v1274 = vld [vmem:[%s826 + $0x18] sm:$0xf]
      %v1275 = vld [vmem:[%s826 + $0x1c] sm:$0xf]
      %s1276 = scalar_lea.vmem %s911, 6
      %v1277 = vld [vmem:[%s1276] sm:$0x3]
      %v1286 = vunpack.c.l.b16 %v1268
      %v1287 = vunpack.c.l.b16 %v1269
      %v1288 = vunpack.c.l.b16 %v1270
      %v1289 = vunpack.c.l.b16 %v1271
      %v1290 = vunpack.c.l.b16 %v1272
      %v1291 = vunpack.c.l.b16 %v1273
      %v1292 = vunpack.c.l.b16 %v1274
      %v1293 = vunpack.c.l.b16 %v1275
      %v1294 = vpack.c.b16 %v1287, %v1286
      %v1295 = vpack.c.b16 %v1289, %v1288
      %v1296 = vpack.c.b16 %v1291, %v1290
      %v1297 = vpack.c.b16 %v1293, %v1292
      %v1299 = vsel %vm968, %v1294, 0
      %v1302 = vsel %vm968, %v1295, 0
      %v1305 = vsel %vm968, %v1296, 0
      %v1308 = vsel %vm968, %v1297, 0
      %v1311 = vsel %vm981, %v1277, 0
      %1313 = vmatprep.subr.bf16.mxu0 0
      %1314 = vmatpush1.bf16.msra.mxu0 0
      %1315 = vmatprep.subr.bf16.mxu0 0
      %1316 = vmatpush1.bf16.msra.mxu0 0
      %1317 = vmatprep.subr.bf16.mxu0 0
      %1318 = vmatpush1.bf16.msra.mxu0 0
      %1319 = vmatprep.subr.bf16.mxu0 0
      %1320 = vmatpush1.bf16.msra.mxu0 0
      %1321 = vmatprep.subr.bf16.mxu0 0
      %1322 = vmatpush1.bf16.msra.mxu0 0
      %1323 = vmatprep.subr.bf16.mxu0 0
      %1324 = vmatpush1.bf16.msra.mxu0 0
      %1325 = vmatprep.subr.bf16.mxu0 0
      %1326 = vmatpush1.bf16.msra.mxu0 0
      %1327 = vmatprep.subr.bf16.mxu0 0
      %1328 = vmatpush1.bf16.msra.mxu0 %v1311
      %1329 = vmatprep.subr.bf16.mxu0 0
      %1330 = vmatpush2.bf16.msra.mxu0 0
      %1331 = vmatprep.subr.bf16.mxu0 0
      %1332 = vmatpush2.bf16.msra.mxu0 0
      %1333 = vmatprep.subr.bf16.mxu0 0
      %1334 = vmatpush2.bf16.msra.mxu0 0
      %1335 = vmatprep.subr.bf16.mxu0 0
      %1336 = vmatpush2.bf16.msra.mxu0 0
      %1337 = vmatprep.subr.bf16.mxu0 0
      %1338 = vmatpush2.bf16.msra.mxu0 0
      %1339 = vmatprep.subr.bf16.mxu0 0
      %1340 = vmatpush2.bf16.msra.mxu0 0
      %1341 = vmatprep.subr.bf16.mxu0 0
      %1342 = vmatpush2.bf16.msra.mxu0 0
      %1343 = vmatprep.subr.bf16.mxu0 0
      %1344 = vmatpush2.bf16.msra.mxu0 0
      %1345 = vmatprep.mubr.bf16.mxu0 0
      %1346 = vmatmul.mubr.bf16.gmra.mxu0 %v1299
      %v1347 = vpop.f32.mrf.mxu0
      %v1348 = vadd.f32 0.0, %v1347
      %v1349 = vpop.f32.mrf.mxu0
      %v1350 = vpop.f32.mrf.mxu0
      %v1351 = vadd.f32 0.0, %v1350
      %v1352 = vpop.f32.mrf.mxu0
      %1353 = vmatprep.mubr.bf16.mxu0 0
      %1354 = vmatmul.mubr.bf16.gmra.mxu0 %v1302
      %v1355 = vpop.f32.mrf.mxu0
      %v1356 = vadd.f32 0.0, %v1355
      %v1357 = vpop.f32.mrf.mxu0
      %v1358 = vpop.f32.mrf.mxu0
      %v1359 = vadd.f32 0.0, %v1358
      %v1360 = vpop.f32.mrf.mxu0
      %1361 = vmatprep.mubr.bf16.mxu0 0
      %1362 = vmatmul.mubr.bf16.gmra.mxu0 %v1305
      %v1363 = vpop.f32.mrf.mxu0
      %v1364 = vadd.f32 0.0, %v1363
      %v1365 = vpop.f32.mrf.mxu0
      %v1366 = vpop.f32.mrf.mxu0
      %v1367 = vadd.f32 0.0, %v1366
      %v1368 = vpop.f32.mrf.mxu0
      %1369 = vmatprep.mubr.bf16.mxu0 0
      %1370 = vmatmul.mubr.bf16.gmra.mxu0 %v1308
      %v1371 = vpop.f32.mrf.mxu0
      %v1372 = vadd.f32 0.0, %v1371
      %v1373 = vpop.f32.mrf.mxu0
      %v1374 = vpop.f32.mrf.mxu0
      %v1375 = vadd.f32 0.0, %v1374
      %v1376 = vpop.f32.mrf.mxu0
      %1377 = vdwg.mxu0
      %v1378 = vadd.f32 %v1260, %v1348
      %v1379 = vadd.f32 %v1261, %v1351
      %v1380 = vadd.f32 %v1262, %v1356
      %v1381 = vadd.f32 %v1263, %v1359
      %v1382 = vadd.f32 %v1264, %v1364
      %v1383 = vadd.f32 %v1265, %v1367
      %v1384 = vadd.f32 %v1266, %v1372
      %v1385 = vadd.f32 %v1267, %v1375
      %v1386 = vld [vmem:[%s845] sm:$0xf]
      %v1387 = vld [vmem:[%s845 + $0x4] sm:$0xf]
      %v1388 = vld [vmem:[%s845 + $0x8] sm:$0xf]
      %v1389 = vld [vmem:[%s845 + $0xc] sm:$0xf]
      %v1390 = vld [vmem:[%s845 + $0x10] sm:$0xf]
      %v1391 = vld [vmem:[%s845 + $0x14] sm:$0xf]
      %v1392 = vld [vmem:[%s845 + $0x18] sm:$0xf]
      %v1393 = vld [vmem:[%s845 + $0x1c] sm:$0xf]
      %s1394 = scalar_lea.vmem %s911, 8
      %v1395 = vld [vmem:[%s1394] sm:$0x3]
      %v1404 = vunpack.c.l.b16 %v1386
      %v1405 = vunpack.c.l.b16 %v1387
      %v1406 = vunpack.c.l.b16 %v1388
      %v1407 = vunpack.c.l.b16 %v1389
      %v1408 = vunpack.c.l.b16 %v1390
      %v1409 = vunpack.c.l.b16 %v1391
      %v1410 = vunpack.c.l.b16 %v1392
      %v1411 = vunpack.c.l.b16 %v1393
      %v1412 = vpack.c.b16 %v1405, %v1404
      %v1413 = vpack.c.b16 %v1407, %v1406
      %v1414 = vpack.c.b16 %v1409, %v1408
      %v1415 = vpack.c.b16 %v1411, %v1410
      %v1417 = vsel %vm968, %v1412, 0
      %v1420 = vsel %vm968, %v1413, 0
      %v1423 = vsel %vm968, %v1414, 0
      %v1426 = vsel %vm968, %v1415, 0
      %v1429 = vsel %vm981, %v1395, 0
      %1431 = vmatprep.subr.bf16.mxu0 0
      %1432 = vmatpush1.bf16.msra.mxu0 0
      %1433 = vmatprep.subr.bf16.mxu0 0
      %1434 = vmatpush1.bf16.msra.mxu0 0
      %1435 = vmatprep.subr.bf16.mxu0 0
      %1436 = vmatpush1.bf16.msra.mxu0 0
      %1437 = vmatprep.subr.bf16.mxu0 0
      %1438 = vmatpush1.bf16.msra.mxu0 0
      %1439 = vmatprep.subr.bf16.mxu0 0
      %1440 = vmatpush1.bf16.msra.mxu0 0
      %1441 = vmatprep.subr.bf16.mxu0 0
      %1442 = vmatpush1.bf16.msra.mxu0 0
      %1443 = vmatprep.subr.bf16.mxu0 0
      %1444 = vmatpush1.bf16.msra.mxu0 0
      %1445 = vmatprep.subr.bf16.mxu0 0
      %1446 = vmatpush1.bf16.msra.mxu0 %v1429
      %1447 = vmatprep.subr.bf16.mxu0 0
      %1448 = vmatpush2.bf16.msra.mxu0 0
      %1449 = vmatprep.subr.bf16.mxu0 0
      %1450 = vmatpush2.bf16.msra.mxu0 0
      %1451 = vmatprep.subr.bf16.mxu0 0
      %1452 = vmatpush2.bf16.msra.mxu0 0
      %1453 = vmatprep.subr.bf16.mxu0 0
      %1454 = vmatpush2.bf16.msra.mxu0 0
      %1455 = vmatprep.subr.bf16.mxu0 0
      %1456 = vmatpush2.bf16.msra.mxu0 0
      %1457 = vmatprep.subr.bf16.mxu0 0
      %1458 = vmatpush2.bf16.msra.mxu0 0
      %1459 = vmatprep.subr.bf16.mxu0 0
      %1460 = vmatpush2.bf16.msra.mxu0 0
      %1461 = vmatprep.subr.bf16.mxu0 0
      %1462 = vmatpush2.bf16.msra.mxu0 0
      %1463 = vmatprep.mubr.bf16.mxu0 0
      %1464 = vmatmul.mubr.bf16.gmra.mxu0 %v1417
      %v1465 = vpop.f32.mrf.mxu0
      %v1466 = vadd.f32 0.0, %v1465
      %v1467 = vpop.f32.mrf.mxu0
      %v1468 = vpop.f32.mrf.mxu0
      %v1469 = vadd.f32 0.0, %v1468
      %v1470 = vpop.f32.mrf.mxu0
      %1471 = vmatprep.mubr.bf16.mxu0 0
      %1472 = vmatmul.mubr.bf16.gmra.mxu0 %v1420
      %v1473 = vpop.f32.mrf.mxu0
      %v1474 = vadd.f32 0.0, %v1473
      %v1475 = vpop.f32.mrf.mxu0
      %v1476 = vpop.f32.mrf.mxu0
      %v1477 = vadd.f32 0.0, %v1476
      %v1478 = vpop.f32.mrf.mxu0
      %1479 = vmatprep.mubr.bf16.mxu0 0
      %1480 = vmatmul.mubr.bf16.gmra.mxu0 %v1423
      %v1481 = vpop.f32.mrf.mxu0
      %v1482 = vadd.f32 0.0, %v1481
      %v1483 = vpop.f32.mrf.mxu0
      %v1484 = vpop.f32.mrf.mxu0
      %v1485 = vadd.f32 0.0, %v1484
      %v1486 = vpop.f32.mrf.mxu0
      %1487 = vmatprep.mubr.bf16.mxu0 0
      %1488 = vmatmul.mubr.bf16.gmra.mxu0 %v1426
      %v1489 = vpop.f32.mrf.mxu0
      %v1490 = vadd.f32 0.0, %v1489
      %v1491 = vpop.f32.mrf.mxu0
      %v1492 = vpop.f32.mrf.mxu0
      %v1493 = vadd.f32 0.0, %v1492
      %v1494 = vpop.f32.mrf.mxu0
      %1495 = vdwg.mxu0
      %v1496 = vadd.f32 %v1378, %v1466
      %v1497 = vadd.f32 %v1379, %v1469
      %v1498 = vadd.f32 %v1380, %v1474
      %v1499 = vadd.f32 %v1381, %v1477
      %v1500 = vadd.f32 %v1382, %v1482
      %v1501 = vadd.f32 %v1383, %v1485
      %v1502 = vadd.f32 %v1384, %v1490
      %v1503 = vadd.f32 %v1385, %v1493
      %v1504 = vld [vmem:[%s864] sm:$0xf]
      %v1505 = vld [vmem:[%s864 + $0x4] sm:$0xf]
      %v1506 = vld [vmem:[%s864 + $0x8] sm:$0xf]
      %v1507 = vld [vmem:[%s864 + $0xc] sm:$0xf]
      %v1508 = vld [vmem:[%s864 + $0x10] sm:$0xf]
      %v1509 = vld [vmem:[%s864 + $0x14] sm:$0xf]
      %v1510 = vld [vmem:[%s864 + $0x18] sm:$0xf]
      %v1511 = vld [vmem:[%s864 + $0x1c] sm:$0xf]
      %s1512 = scalar_lea.vmem %s911, 10
      %v1513 = vld [vmem:[%s1512] sm:$0x3]
      %v1522 = vunpack.c.l.b16 %v1504
      %v1523 = vunpack.c.l.b16 %v1505
      %v1524 = vunpack.c.l.b16 %v1506
      %v1525 = vunpack.c.l.b16 %v1507
      %v1526 = vunpack.c.l.b16 %v1508
      %v1527 = vunpack.c.l.b16 %v1509
      %v1528 = vunpack.c.l.b16 %v1510
      %v1529 = vunpack.c.l.b16 %v1511
      %v1530 = vpack.c.b16 %v1523, %v1522
      %v1531 = vpack.c.b16 %v1525, %v1524
      %v1532 = vpack.c.b16 %v1527, %v1526
      %v1533 = vpack.c.b16 %v1529, %v1528
      %v1535 = vsel %vm968, %v1530, 0
      %v1538 = vsel %vm968, %v1531, 0
      %v1541 = vsel %vm968, %v1532, 0
      %v1544 = vsel %vm968, %v1533, 0
      %v1547 = vsel %vm981, %v1513, 0
      %1549 = vmatprep.subr.bf16.mxu0 0
      %1550 = vmatpush1.bf16.msra.mxu0 0
      %1551 = vmatprep.subr.bf16.mxu0 0
      %1552 = vmatpush1.bf16.msra.mxu0 0
      %1553 = vmatprep.subr.bf16.mxu0 0
      %1554 = vmatpush1.bf16.msra.mxu0 0
      %1555 = vmatprep.subr.bf16.mxu0 0
      %1556 = vmatpush1.bf16.msra.mxu0 0
      %1557 = vmatprep.subr.bf16.mxu0 0
      %1558 = vmatpush1.bf16.msra.mxu0 0
      %1559 = vmatprep.subr.bf16.mxu0 0
      %1560 = vmatpush1.bf16.msra.mxu0 0
      %1561 = vmatprep.subr.bf16.mxu0 0
      %1562 = vmatpush1.bf16.msra.mxu0 0
      %1563 = vmatprep.subr.bf16.mxu0 0
      %1564 = vmatpush1.bf16.msra.mxu0 %v1547
      %1565 = vmatprep.subr.bf16.mxu0 0
      %1566 = vmatpush2.bf16.msra.mxu0 0
      %1567 = vmatprep.subr.bf16.mxu0 0
      %1568 = vmatpush2.bf16.msra.mxu0 0
      %1569 = vmatprep.subr.bf16.mxu0 0
      %1570 = vmatpush2.bf16.msra.mxu0 0
      %1571 = vmatprep.subr.bf16.mxu0 0
      %1572 = vmatpush2.bf16.msra.mxu0 0
      %1573 = vmatprep.subr.bf16.mxu0 0
      %1574 = vmatpush2.bf16.msra.mxu0 0
      %1575 = vmatprep.subr.bf16.mxu0 0
      %1576 = vmatpush2.bf16.msra.mxu0 0
      %1577 = vmatprep.subr.bf16.mxu0 0
      %1578 = vmatpush2.bf16.msra.mxu0 0
      %1579 = vmatprep.subr.bf16.mxu0 0
      %1580 = vmatpush2.bf16.msra.mxu0 0
      %1581 = vmatprep.mubr.bf16.mxu0 0
      %1582 = vmatmul.mubr.bf16.gmra.mxu0 %v1535
      %v1583 = vpop.f32.mrf.mxu0
      %v1584 = vadd.f32 0.0, %v1583
      %v1585 = vpop.f32.mrf.mxu0
      %v1586 = vpop.f32.mrf.mxu0
      %v1587 = vadd.f32 0.0, %v1586
      %v1588 = vpop.f32.mrf.mxu0
      %1589 = vmatprep.mubr.bf16.mxu0 0
      %1590 = vmatmul.mubr.bf16.gmra.mxu0 %v1538
      %v1591 = vpop.f32.mrf.mxu0
      %v1592 = vadd.f32 0.0, %v1591
      %v1593 = vpop.f32.mrf.mxu0
      %v1594 = vpop.f32.mrf.mxu0
      %v1595 = vadd.f32 0.0, %v1594
      %v1596 = vpop.f32.mrf.mxu0
      %1597 = vmatprep.mubr.bf16.mxu0 0
      %1598 = vmatmul.mubr.bf16.gmra.mxu0 %v1541
      %v1599 = vpop.f32.mrf.mxu0
      %v1600 = vadd.f32 0.0, %v1599
      %v1601 = vpop.f32.mrf.mxu0
      %v1602 = vpop.f32.mrf.mxu0
      %v1603 = vadd.f32 0.0, %v1602
      %v1604 = vpop.f32.mrf.mxu0
      %1605 = vmatprep.mubr.bf16.mxu0 0
      %1606 = vmatmul.mubr.bf16.gmra.mxu0 %v1544
      %v1607 = vpop.f32.mrf.mxu0
      %v1608 = vadd.f32 0.0, %v1607
      %v1609 = vpop.f32.mrf.mxu0
      %v1610 = vpop.f32.mrf.mxu0
      %v1611 = vadd.f32 0.0, %v1610
      %v1612 = vpop.f32.mrf.mxu0
      %1613 = vdwg.mxu0
      %v1614 = vadd.f32 %v1496, %v1584
      %v1615 = vadd.f32 %v1497, %v1587
      %v1616 = vadd.f32 %v1498, %v1592
      %v1617 = vadd.f32 %v1499, %v1595
      %v1618 = vadd.f32 %v1500, %v1600
      %v1619 = vadd.f32 %v1501, %v1603
      %v1620 = vadd.f32 %v1502, %v1608
      %v1621 = vadd.f32 %v1503, %v1611
      %v1622 = vld [vmem:[%s914] sm:$0x1]
      %v1624 = vlaneseq
      %v1625 = vshrl.u32 %v1624, 7
      %v1626 = vsub.s32 0, %v1625
      %v1627 = vrot.slane %v1622, %v1626
      %v1629 = vadd.f32 %v1614, %v1627
      %v1630 = vadd.f32 %v1615, %v1627
      %v1631 = vadd.f32 %v1616, %v1627
      %v1632 = vadd.f32 %v1617, %v1627
      %v1633 = vadd.f32 %v1618, %v1627
      %v1634 = vadd.f32 %v1619, %v1627
      %v1635 = vadd.f32 %v1620, %v1627
      %v1636 = vadd.f32 %v1621, %v1627
      %1637 = vst.msk [vmem:[#allocation2] sm:$0xff] %vm968, %v1629
      %1638 = vst.msk [vmem:[#allocation2 + $0x8] sm:$0xff] %vm968, %v1630
      %1639 = vst.msk [vmem:[#allocation2 + $0x10] sm:$0xff] %vm968, %v1631
      %1640 = vst.msk [vmem:[#allocation2 + $0x18] sm:$0xff] %vm968, %v1632
      %1641 = vst.msk [vmem:[#allocation2 + $0x20] sm:$0xff] %vm968, %v1633
      %1642 = vst.msk [vmem:[#allocation2 + $0x28] sm:$0xff] %vm968, %v1634
      %1643 = vst.msk [vmem:[#allocation2 + $0x30] sm:$0xff] %vm968, %v1635
      %1644 = vst.msk [vmem:[#allocation2 + $0x38] sm:$0xff] %vm968, %v1636
      %v1645 = vld [vmem:[#allocation2] sm:$0xff]
      %v1646 = vld [vmem:[#allocation2 + $0x8] sm:$0xff]
      %v1647 = vld [vmem:[#allocation2 + $0x10] sm:$0xff]
      %v1648 = vld [vmem:[#allocation2 + $0x18] sm:$0xff]
      %v1649 = vld [vmem:[#allocation2 + $0x20] sm:$0xff]
      %v1650 = vld [vmem:[#allocation2 + $0x28] sm:$0xff]
      %v1651 = vld [vmem:[#allocation2 + $0x30] sm:$0xff]
      %v1652 = vld [vmem:[%s769 + $0x4] sm:$0xf]
      %v1653 = vld [vmem:[%s769 + $0x8] sm:$0xf]
      %v1654 = vld [vmem:[%s769 + $0xc] sm:$0xf]
      %v1655 = vld [vmem:[%s769 + $0x10] sm:$0xf]
      %v1656 = vld [vmem:[%s769 + $0x14] sm:$0xf]
      %v1657 = vld [vmem:[%s769 + $0x18] sm:$0xf]
      %v1658 = vld [vmem:[%s769 + $0x1c] sm:$0xf]
      %s1659 = scalar_lea.vmem %s911, 12
      %v1660 = vld [vmem:[%s1659] sm:$0x3]
      %v1668 = vunpack.c.l.b16 %v1652
      %v1669 = vunpack.c.l.b16 %v1653
      %v1670 = vunpack.c.l.b16 %v1654
      %v1671 = vunpack.c.l.b16 %v1655
      %v1672 = vunpack.c.l.b16 %v1656
      %v1673 = vunpack.c.l.b16 %v1657
      %v1674 = vunpack.c.l.b16 %v1658
      %v1675 = vpack.c.b16 %v1669, %v1668
      %v1676 = vpack.c.b16 %v1671, %v1670
      %v1677 = vpack.c.b16 %v1673, %v1672
      %v1678 = vpack.c.b16 %v1674, %v1674
      %v1680 = vsel %vm968, %v1675, 0
      %v1683 = vsel %vm968, %v1676, 0
      %v1686 = vsel %vm968, %v1677, 0
      %v1689 = vsel %vm968, %v1678, 0
      %v1692 = vsel %vm981, %v1660, 0
      %1694 = vmatprep.subr.bf16.mxu0 0
      %1695 = vmatpush1.bf16.msra.mxu0 0
      %1696 = vmatprep.subr.bf16.mxu0 0
      %1697 = vmatpush1.bf16.msra.mxu0 0
      %1698 = vmatprep.subr.bf16.mxu0 0
      %1699 = vmatpush1.bf16.msra.mxu0 0
      %1700 = vmatprep.subr.bf16.mxu0 0
      %1701 = vmatpush1.bf16.msra.mxu0 0
      %1702 = vmatprep.subr.bf16.mxu0 0
      %1703 = vmatpush1.bf16.msra.mxu0 0
      %1704 = vmatprep.subr.bf16.mxu0 0
      %1705 = vmatpush1.bf16.msra.mxu0 0
      %1706 = vmatprep.subr.bf16.mxu0 0
      %1707 = vmatpush1.bf16.msra.mxu0 0
      %1708 = vmatprep.subr.bf16.mxu0 0
      %1709 = vmatpush1.bf16.msra.mxu0 %v1692
      %1710 = vmatprep.subr.bf16.mxu0 0
      %1711 = vmatpush2.bf16.msra.mxu0 0
      %1712 = vmatprep.subr.bf16.mxu0 0
      %1713 = vmatpush2.bf16.msra.mxu0 0
      %1714 = vmatprep.subr.bf16.mxu0 0
      %1715 = vmatpush2.bf16.msra.mxu0 0
      %1716 = vmatprep.subr.bf16.mxu0 0
      %1717 = vmatpush2.bf16.msra.mxu0 0
      %1718 = vmatprep.subr.bf16.mxu0 0
      %1719 = vmatpush2.bf16.msra.mxu0 0
      %1720 = vmatprep.subr.bf16.mxu0 0
      %1721 = vmatpush2.bf16.msra.mxu0 0
      %1722 = vmatprep.subr.bf16.mxu0 0
      %1723 = vmatpush2.bf16.msra.mxu0 0
      %1724 = vmatprep.subr.bf16.mxu0 0
      %1725 = vmatpush2.bf16.msra.mxu0 0
      %1726 = vmatprep.mubr.bf16.mxu0 0
      %1727 = vmatmul.mubr.bf16.gmra.mxu0 %v1680
      %v1728 = vpop.f32.mrf.mxu0
      %v1729 = vadd.f32 0.0, %v1728
      %v1730 = vpop.f32.mrf.mxu0
      %v1731 = vpop.f32.mrf.mxu0
      %v1732 = vadd.f32 0.0, %v1731
      %v1733 = vpop.f32.mrf.mxu0
      %1734 = vmatprep.mubr.bf16.mxu0 0
      %1735 = vmatmul.mubr.bf16.gmra.mxu0 %v1683
      %v1736 = vpop.f32.mrf.mxu0
      %v1737 = vadd.f32 0.0, %v1736
      %v1738 = vpop.f32.mrf.mxu0
      %v1739 = vpop.f32.mrf.mxu0
      %v1740 = vadd.f32 0.0, %v1739
      %v1741 = vpop.f32.mrf.mxu0
      %1742 = vmatprep.mubr.bf16.mxu0 0
      %1743 = vmatmul.mubr.bf16.gmra.mxu0 %v1686
      %v1744 = vpop.f32.mrf.mxu0
      %v1745 = vadd.f32 0.0, %v1744
      %v1746 = vpop.f32.mrf.mxu0
      %v1747 = vpop.f32.mrf.mxu0
      %v1748 = vadd.f32 0.0, %v1747
      %v1749 = vpop.f32.mrf.mxu0
      %1750 = vmatprep.mubr.bf16.mxu0 0
      %1751 = vmatmul.mubr.bf16.gmra.mxu0 %v1689
      %v1752 = vpop.f32.mrf.mxu0
      %v1753 = vadd.f32 0.0, %v1752
      %v1754 = vpop.f32.mrf.mxu0
      %v1755 = vpop.f32.mrf.mxu0
      %v1756 = vpop.f32.mrf.mxu0
      %1757 = vdwg.mxu0
      %v1758 = vadd.f32 %v1645, %v1729
      %v1759 = vadd.f32 %v1646, %v1732
      %v1760 = vadd.f32 %v1647, %v1737
      %v1761 = vadd.f32 %v1648, %v1740
      %v1762 = vadd.f32 %v1649, %v1745
      %v1763 = vadd.f32 %v1650, %v1748
      %v1764 = vadd.f32 %v1651, %v1753
      %1765 = vst.msk [vmem:[#allocation2] sm:$0xff] %vm968, %v1758
      %1766 = vst.msk [vmem:[#allocation2 + $0x8] sm:$0xff] %vm968, %v1759
      %1767 = vst.msk [vmem:[#allocation2 + $0x10] sm:$0xff] %vm968, %v1760
      %1768 = vst.msk [vmem:[#allocation2 + $0x18] sm:$0xff] %vm968, %v1761
      %1769 = vst.msk [vmem:[#allocation2 + $0x20] sm:$0xff] %vm968, %v1762
      %1770 = vst.msk [vmem:[#allocation2 + $0x28] sm:$0xff] %vm968, %v1763
      %1771 = vst.msk [vmem:[#allocation2 + $0x30] sm:$0xff] %vm968, %v1764
      %v1772 = vld [vmem:[#allocation2 + $0x38] sm:$0xff]
      %v1773 = vld [vmem:[%s879] sm:$0xf]
      %v1774 = vld [vmem:[%s1659] sm:$0x3]
      %v1776 = vsel %vm968, %v1773, 0
      %v1779 = vsel %vm981, %v1774, 0
      %1781 = vmatprep.subr.bf16.mxu0 0
      %1782 = vmatpush1.bf16.msra.mxu0 0
      %1783 = vmatprep.subr.bf16.mxu0 0
      %1784 = vmatpush1.bf16.msra.mxu0 0
      %1785 = vmatprep.subr.bf16.mxu0 0
      %1786 = vmatpush1.bf16.msra.mxu0 0
      %1787 = vmatprep.subr.bf16.mxu0 0
      %1788 = vmatpush1.bf16.msra.mxu0 0
      %1789 = vmatprep.subr.bf16.mxu0 0
      %1790 = vmatpush1.bf16.msra.mxu0 0
      %1791 = vmatprep.subr.bf16.mxu0 0
      %1792 = vmatpush1.bf16.msra.mxu0 0
      %1793 = vmatprep.subr.bf16.mxu0 0
      %1794 = vmatpush1.bf16.msra.mxu0 0
      %1795 = vmatprep.subr.bf16.mxu0 0
      %1796 = vmatpush1.bf16.msra.mxu0 %v1779
      %1797 = vmatprep.subr.bf16.mxu0 0
      %1798 = vmatpush2.bf16.msra.mxu0 0
      %1799 = vmatprep.subr.bf16.mxu0 0
      %1800 = vmatpush2.bf16.msra.mxu0 0
      %1801 = vmatprep.subr.bf16.mxu0 0
      %1802 = vmatpush2.bf16.msra.mxu0 0
      %1803 = vmatprep.subr.bf16.mxu0 0
      %1804 = vmatpush2.bf16.msra.mxu0 0
      %1805 = vmatprep.subr.bf16.mxu0 0
      %1806 = vmatpush2.bf16.msra.mxu0 0
      %1807 = vmatprep.subr.bf16.mxu0 0
      %1808 = vmatpush2.bf16.msra.mxu0 0
      %1809 = vmatprep.subr.bf16.mxu0 0
      %1810 = vmatpush2.bf16.msra.mxu0 0
      %1811 = vmatprep.subr.bf16.mxu0 0
      %1812 = vmatpush2.bf16.msra.mxu0 0
      %1813 = vmatprep.mubr.bf16.mxu0 0
      %1814 = vmatmul.mubr.bf16.gmra.mxu0 %v1776
      %v1815 = vpop.f32.mrf.mxu0
      %v1816 = vadd.f32 0.0, %v1815
      %v1817 = vpop.f32.mrf.mxu0
      %v1818 = vpop.f32.mrf.mxu0
      %v1819 = vpop.f32.mrf.mxu0
      %1820 = vdwg.mxu0
      %v1821 = vadd.f32 %v1772, %v1816
      %1822 = vst.msk [vmem:[#allocation2 + $0x38] sm:$0xff] %vm968, %v1821
      %v1823 = vld [vmem:[#allocation2] sm:$0xff]
      %v1824 = vld [vmem:[#allocation2 + $0x8] sm:$0xff]
      %v1825 = vld [vmem:[#allocation2 + $0x10] sm:$0xff]
      %v1826 = vld [vmem:[#allocation2 + $0x18] sm:$0xff]
      %v1827 = vld [vmem:[#allocation2 + $0x20] sm:$0xff]
      %v1828 = vld [vmem:[#allocation2 + $0x28] sm:$0xff]
      %v1829 = vld [vmem:[#allocation2 + $0x30] sm:$0xff]
      %v1830 = vld [vmem:[%s788 + $0x4] sm:$0xf]
      %v1831 = vld [vmem:[%s788 + $0x8] sm:$0xf]
      %v1832 = vld [vmem:[%s788 + $0xc] sm:$0xf]
      %v1833 = vld [vmem:[%s788 + $0x10] sm:$0xf]
      %v1834 = vld [vmem:[%s788 + $0x14] sm:$0xf]
      %v1835 = vld [vmem:[%s788 + $0x18] sm:$0xf]
      %v1836 = vld [vmem:[%s788 + $0x1c] sm:$0xf]
      %s1837 = scalar_lea.vmem %s911, 14
      %v1838 = vld [vmem:[%s1837] sm:$0x3]
      %v1846 = vunpack.c.l.b16 %v1830
      %v1847 = vunpack.c.l.b16 %v1831
      %v1848 = vunpack.c.l.b16 %v1832
      %v1849 = vunpack.c.l.b16 %v1833
      %v1850 = vunpack.c.l.b16 %v1834
      %v1851 = vunpack.c.l.b16 %v1835
      %v1852 = vunpack.c.l.b16 %v1836
      %v1853 = vpack.c.b16 %v1847, %v1846
      %v1854 = vpack.c.b16 %v1849, %v1848
      %v1855 = vpack.c.b16 %v1851, %v1850
      %v1856 = vpack.c.b16 %v1852, %v1852
      %v1858 = vsel %vm968, %v1853, 0
      %v1861 = vsel %vm968, %v1854, 0
      %v1864 = vsel %vm968, %v1855, 0
      %v1867 = vsel %vm968, %v1856, 0
      %v1870 = vsel %vm981, %v1838, 0
      %1872 = vmatprep.subr.bf16.mxu0 0
      %1873 = vmatpush1.bf16.msra.mxu0 0
      %1874 = vmatprep.subr.bf16.mxu0 0
      %1875 = vmatpush1.bf16.msra.mxu0 0
      %1876 = vmatprep.subr.bf16.mxu0 0
      %1877 = vmatpush1.bf16.msra.mxu0 0
      %1878 = vmatprep.subr.bf16.mxu0 0
      %1879 = vmatpush1.bf16.msra.mxu0 0
      %1880 = vmatprep.subr.bf16.mxu0 0
      %1881 = vmatpush1.bf16.msra.mxu0 0
      %1882 = vmatprep.subr.bf16.mxu0 0
      %1883 = vmatpush1.bf16.msra.mxu0 0
      %1884 = vmatprep.subr.bf16.mxu0 0
      %1885 = vmatpush1.bf16.msra.mxu0 0
      %1886 = vmatprep.subr.bf16.mxu0 0
      %1887 = vmatpush1.bf16.msra.mxu0 %v1870
      %1888 = vmatprep.subr.bf16.mxu0 0
      %1889 = vmatpush2.bf16.msra.mxu0 0
      %1890 = vmatprep.subr.bf16.mxu0 0
      %1891 = vmatpush2.bf16.msra.mxu0 0
      %1892 = vmatprep.subr.bf16.mxu0 0
      %1893 = vmatpush2.bf16.msra.mxu0 0
      %1894 = vmatprep.subr.bf16.mxu0 0
      %1895 = vmatpush2.bf16.msra.mxu0 0
      %1896 = vmatprep.subr.bf16.mxu0 0
      %1897 = vmatpush2.bf16.msra.mxu0 0
      %1898 = vmatprep.subr.bf16.mxu0 0
      %1899 = vmatpush2.bf16.msra.mxu0 0
      %1900 = vmatprep.subr.bf16.mxu0 0
      %1901 = vmatpush2.bf16.msra.mxu0 0
      %1902 = vmatprep.subr.bf16.mxu0 0
      %1903 = vmatpush2.bf16.msra.mxu0 0
      %1904 = vmatprep.mubr.bf16.mxu0 0
      %1905 = vmatmul.mubr.bf16.gmra.mxu0 %v1858
      %v1906 = vpop.f32.mrf.mxu0
      %v1907 = vadd.f32 0.0, %v1906
      %v1908 = vpop.f32.mrf.mxu0
      %v1909 = vpop.f32.mrf.mxu0
      %v1910 = vadd.f32 0.0, %v1909
      %v1911 = vpop.f32.mrf.mxu0
      %1912 = vmatprep.mubr.bf16.mxu0 0
      %1913 = vmatmul.mubr.bf16.gmra.mxu0 %v1861
      %v1914 = vpop.f32.mrf.mxu0
      %v1915 = vadd.f32 0.0, %v1914
      %v1916 = vpop.f32.mrf.mxu0
      %v1917 = vpop.f32.mrf.mxu0
      %v1918 = vadd.f32 0.0, %v1917
      %v1919 = vpop.f32.mrf.mxu0
      %1920 = vmatprep.mubr.bf16.mxu0 0
      %1921 = vmatmul.mubr.bf16.gmra.mxu0 %v1864
      %v1922 = vpop.f32.mrf.mxu0
      %v1923 = vadd.f32 0.0, %v1922
      %v1924 = vpop.f32.mrf.mxu0
      %v1925 = vpop.f32.mrf.mxu0
      %v1926 = vadd.f32 0.0, %v1925
      %v1927 = vpop.f32.mrf.mxu0
      %1928 = vmatprep.mubr.bf16.mxu0 0
      %1929 = vmatmul.mubr.bf16.gmra.mxu0 %v1867
      %v1930 = vpop.f32.mrf.mxu0
      %v1931 = vadd.f32 0.0, %v1930
      %v1932 = vpop.f32.mrf.mxu0
      %v1933 = vpop.f32.mrf.mxu0
      %v1934 = vpop.f32.mrf.mxu0
      %1935 = vdwg.mxu0
      %v1936 = vadd.f32 %v1823, %v1907
      %v1937 = vadd.f32 %v1824, %v1910
      %v1938 = vadd.f32 %v1825, %v1915
      %v1939 = vadd.f32 %v1826, %v1918
      %v1940 = vadd.f32 %v1827, %v1923
      %v1941 = vadd.f32 %v1828, %v1926
      %v1942 = vadd.f32 %v1829, %v1931
      %1943 = vst.msk [vmem:[#allocation2] sm:$0xff] %vm968, %v1936
      %1944 = vst.msk [vmem:[#allocation2 + $0x8] sm:$0xff] %vm968, %v1937
      %1945 = vst.msk [vmem:[#allocation2 + $0x10] sm:$0xff] %vm968, %v1938
      %1946 = vst.msk [vmem:[#allocation2 + $0x18] sm:$0xff] %vm968, %v1939
      %1947 = vst.msk [vmem:[#allocation2 + $0x20] sm:$0xff] %vm968, %v1940
      %1948 = vst.msk [vmem:[#allocation2 + $0x28] sm:$0xff] %vm968, %v1941
      %1949 = vst.msk [vmem:[#allocation2 + $0x30] sm:$0xff] %vm968, %v1942
      %v1950 = vld [vmem:[#allocation2 + $0x38] sm:$0xff]
      %v1951 = vld [vmem:[%s892] sm:$0xf]
      %v1952 = vld [vmem:[%s1837] sm:$0x3]
      %v1954 = vsel %vm968, %v1951, 0
      %v1957 = vsel %vm981, %v1952, 0
      %1959 = vmatprep.subr.bf16.mxu0 0
      %1960 = vmatpush1.bf16.msra.mxu0 0
      %1961 = vmatprep.subr.bf16.mxu0 0
      %1962 = vmatpush1.bf16.msra.mxu0 0
      %1963 = vmatprep.subr.bf16.mxu0 0
      %1964 = vmatpush1.bf16.msra.mxu0 0
      %1965 = vmatprep.subr.bf16.mxu0 0
      %1966 = vmatpush1.bf16.msra.mxu0 0
      %1967 = vmatprep.subr.bf16.mxu0 0
      %1968 = vmatpush1.bf16.msra.mxu0 0
      %1969 = vmatprep.subr.bf16.mxu0 0
      %1970 = vmatpush1.bf16.msra.mxu0 0
      %1971 = vmatprep.subr.bf16.mxu0 0
      %1972 = vmatpush1.bf16.msra.mxu0 0
      %1973 = vmatprep.subr.bf16.mxu0 0
      %1974 = vmatpush1.bf16.msra.mxu0 %v1957
      %1975 = vmatprep.subr.bf16.mxu0 0
      %1976 = vmatpush2.bf16.msra.mxu0 0
      %1977 = vmatprep.subr.bf16.mxu0 0
      %1978 = vmatpush2.bf16.msra.mxu0 0
      %1979 = vmatprep.subr.bf16.mxu0 0
      %1980 = vmatpush2.bf16.msra.mxu0 0
      %1981 = vmatprep.subr.bf16.mxu0 0
      %1982 = vmatpush2.bf16.msra.mxu0 0
      %1983 = vmatprep.subr.bf16.mxu0 0
      %1984 = vmatpush2.bf16.msra.mxu0 0
      %1985 = vmatprep.subr.bf16.mxu0 0
      %1986 = vmatpush2.bf16.msra.mxu0 0
      %1987 = vmatprep.subr.bf16.mxu0 0
      %1988 = vmatpush2.bf16.msra.mxu0 0
      %1989 = vmatprep.subr.bf16.mxu0 0
      %1990 = vmatpush2.bf16.msra.mxu0 0
      %1991 = vmatprep.mubr.bf16.mxu0 0
      %1992 = vmatmul.mubr.bf16.gmra.mxu0 %v1954
      %v1993 = vpop.f32.mrf.mxu0
      %v1994 = vadd.f32 0.0, %v1993
      %v1995 = vpop.f32.mrf.mxu0
      %v1996 = vpop.f32.mrf.mxu0
      %v1997 = vpop.f32.mrf.mxu0
      %1998 = vdwg.mxu0
      %v1999 = vadd.f32 %v1950, %v1994
      %2000 = vst.msk [vmem:[#allocation2 + $0x38] sm:$0xff] %vm968, %v1999
      %v2001 = vld [vmem:[#allocation2] sm:$0xff]
      %v2002 = vld [vmem:[#allocation2 + $0x8] sm:$0xff]
      %v2003 = vld [vmem:[#allocation2 + $0x10] sm:$0xff]
      %v2004 = vld [vmem:[#allocation2 + $0x18] sm:$0xff]
      %v2005 = vld [vmem:[#allocation2 + $0x20] sm:$0xff]
      %v2006 = vld [vmem:[#allocation2 + $0x28] sm:$0xff]
      %v2007 = vld [vmem:[#allocation2 + $0x30] sm:$0xff]
      %v2008 = vld [vmem:[%s807 + $0x4] sm:$0xf]
      %v2009 = vld [vmem:[%s807 + $0x8] sm:$0xf]
      %v2010 = vld [vmem:[%s807 + $0xc] sm:$0xf]
      %v2011 = vld [vmem:[%s807 + $0x10] sm:$0xf]
      %v2012 = vld [vmem:[%s807 + $0x14] sm:$0xf]
      %v2013 = vld [vmem:[%s807 + $0x18] sm:$0xf]
      %v2014 = vld [vmem:[%s807 + $0x1c] sm:$0xf]
      %s2015 = scalar_lea.vmem %s911, 16
      %v2016 = vld [vmem:[%s2015] sm:$0x3]
      %v2024 = vunpack.c.l.b16 %v2008
      %v2025 = vunpack.c.l.b16 %v2009
      %v2026 = vunpack.c.l.b16 %v2010
      %v2027 = vunpack.c.l.b16 %v2011
      %v2028 = vunpack.c.l.b16 %v2012
      %v2029 = vunpack.c.l.b16 %v2013
      %v2030 = vunpack.c.l.b16 %v2014
      %v2031 = vpack.c.b16 %v2025, %v2024
      %v2032 = vpack.c.b16 %v2027, %v2026
      %v2033 = vpack.c.b16 %v2029, %v2028
      %v2034 = vpack.c.b16 %v2030, %v2030
      %v2036 = vsel %vm968, %v2031, 0
      %v2039 = vsel %vm968, %v2032, 0
      %v2042 = vsel %vm968, %v2033, 0
      %v2045 = vsel %vm968, %v2034, 0
      %v2048 = vsel %vm981, %v2016, 0
      %2050 = vmatprep.subr.bf16.mxu0 0
      %2051 = vmatpush1.bf16.msra.mxu0 0
      %2052 = vmatprep.subr.bf16.mxu0 0
      %2053 = vmatpush1.bf16.msra.mxu0 0
      %2054 = vmatprep.subr.bf16.mxu0 0
      %2055 = vmatpush1.bf16.msra.mxu0 0
      %2056 = vmatprep.subr.bf16.mxu0 0
      %2057 = vmatpush1.bf16.msra.mxu0 0
      %2058 = vmatprep.subr.bf16.mxu0 0
      %2059 = vmatpush1.bf16.msra.mxu0 0
      %2060 = vmatprep.subr.bf16.mxu0 0
      %2061 = vmatpush1.bf16.msra.mxu0 0
      %2062 = vmatprep.subr.bf16.mxu0 0
      %2063 = vmatpush1.bf16.msra.mxu0 0
      %2064 = vmatprep.subr.bf16.mxu0 0
      %2065 = vmatpush1.bf16.msra.mxu0 %v2048
      %2066 = vmatprep.subr.bf16.mxu0 0
      %2067 = vmatpush2.bf16.msra.mxu0 0
      %2068 = vmatprep.subr.bf16.mxu0 0
      %2069 = vmatpush2.bf16.msra.mxu0 0
      %2070 = vmatprep.subr.bf16.mxu0 0
      %2071 = vmatpush2.bf16.msra.mxu0 0
      %2072 = vmatprep.subr.bf16.mxu0 0
      %2073 = vmatpush2.bf16.msra.mxu0 0
      %2074 = vmatprep.subr.bf16.mxu0 0
      %2075 = vmatpush2.bf16.msra.mxu0 0
      %2076 = vmatprep.subr.bf16.mxu0 0
      %2077 = vmatpush2.bf16.msra.mxu0 0
      %2078 = vmatprep.subr.bf16.mxu0 0
      %2079 = vmatpush2.bf16.msra.mxu0 0
      %2080 = vmatprep.subr.bf16.mxu0 0
      %2081 = vmatpush2.bf16.msra.mxu0 0
      %2082 = vmatprep.mubr.bf16.mxu0 0
      %2083 = vmatmul.mubr.bf16.gmra.mxu0 %v2036
      %v2084 = vpop.f32.mrf.mxu0
      %v2085 = vadd.f32 0.0, %v2084
      %v2086 = vpop.f32.mrf.mxu0
      %v2087 = vpop.f32.mrf.mxu0
      %v2088 = vadd.f32 0.0, %v2087
      %v2089 = vpop.f32.mrf.mxu0
      %2090 = vmatprep.mubr.bf16.mxu0 0
      %2091 = vmatmul.mubr.bf16.gmra.mxu0 %v2039
      %v2092 = vpop.f32.mrf.mxu0
      %v2093 = vadd.f32 0.0, %v2092
      %v2094 = vpop.f32.mrf.mxu0
      %v2095 = vpop.f32.mrf.mxu0
      %v2096 = vadd.f32 0.0, %v2095
      %v2097 = vpop.f32.mrf.mxu0
      %2098 = vmatprep.mubr.bf16.mxu0 0
      %2099 = vmatmul.mubr.bf16.gmra.mxu0 %v2042
      %v2100 = vpop.f32.mrf.mxu0
      %v2101 = vadd.f32 0.0, %v2100
      %v2102 = vpop.f32.mrf.mxu0
      %v2103 = vpop.f32.mrf.mxu0
      %v2104 = vadd.f32 0.0, %v2103
      %v2105 = vpop.f32.mrf.mxu0
      %2106 = vmatprep.mubr.bf16.mxu0 0
      %2107 = vmatmul.mubr.bf16.gmra.mxu0 %v2045
      %v2108 = vpop.f32.mrf.mxu0
      %v2109 = vadd.f32 0.0, %v2108
      %v2110 = vpop.f32.mrf.mxu0
      %v2111 = vpop.f32.mrf.mxu0
      %v2112 = vpop.f32.mrf.mxu0
      %2113 = vdwg.mxu0
      %v2114 = vadd.f32 %v2001, %v2085
      %v2115 = vadd.f32 %v2002, %v2088
      %v2116 = vadd.f32 %v2003, %v2093
      %v2117 = vadd.f32 %v2004, %v2096
      %v2118 = vadd.f32 %v2005, %v2101
      %v2119 = vadd.f32 %v2006, %v2104
      %v2120 = vadd.f32 %v2007, %v2109
      %2121 = vst.msk [vmem:[#allocation2] sm:$0xff] %vm968, %v2114
      %2122 = vst.msk [vmem:[#allocation2 + $0x8] sm:$0xff] %vm968, %v2115
      %2123 = vst.msk [vmem:[#allocation2 + $0x10] sm:$0xff] %vm968, %v2116
      %2124 = vst.msk [vmem:[#allocation2 + $0x18] sm:$0xff] %vm968, %v2117
      %2125 = vst.msk [vmem:[#allocation2 + $0x20] sm:$0xff] %vm968, %v2118
      %2126 = vst.msk [vmem:[#allocation2 + $0x28] sm:$0xff] %vm968, %v2119
      %2127 = vst.msk [vmem:[#allocation2 + $0x30] sm:$0xff] %vm968, %v2120
      %v2128 = vld [vmem:[#allocation2 + $0x38] sm:$0xff]
      %v2129 = vld [vmem:[%s905] sm:$0xf]
      %v2130 = vld [vmem:[%s2015] sm:$0x3]
      %v2132 = vsel %vm968, %v2129, 0
      %v2135 = vsel %vm981, %v2130, 0
      %2137 = vmatprep.subr.bf16.mxu0 0
      %2138 = vmatpush1.bf16.msra.mxu0 0
      %2139 = vmatprep.subr.bf16.mxu0 0
      %2140 = vmatpush1.bf16.msra.mxu0 0
      %2141 = vmatprep.subr.bf16.mxu0 0
      %2142 = vmatpush1.bf16.msra.mxu0 0
      %2143 = vmatprep.subr.bf16.mxu0 0
      %2144 = vmatpush1.bf16.msra.mxu0 0
      %2145 = vmatprep.subr.bf16.mxu0 0
      %2146 = vmatpush1.bf16.msra.mxu0 0
      %2147 = vmatprep.subr.bf16.mxu0 0
      %2148 = vmatpush1.bf16.msra.mxu0 0
      %2149 = vmatprep.subr.bf16.mxu0 0
      %2150 = vmatpush1.bf16.msra.mxu0 0
      %2151 = vmatprep.subr.bf16.mxu0 0
      %2152 = vmatpush1.bf16.msra.mxu0 %v2135
      %2153 = vmatprep.subr.bf16.mxu0 0
      %2154 = vmatpush2.bf16.msra.mxu0 0
      %2155 = vmatprep.subr.bf16.mxu0 0
      %2156 = vmatpush2.bf16.msra.mxu0 0
      %2157 = vmatprep.subr.bf16.mxu0 0
      %2158 = vmatpush2.bf16.msra.mxu0 0
      %2159 = vmatprep.subr.bf16.mxu0 0
      %2160 = vmatpush2.bf16.msra.mxu0 0
      %2161 = vmatprep.subr.bf16.mxu0 0
      %2162 = vmatpush2.bf16.msra.mxu0 0
      %2163 = vmatprep.subr.bf16.mxu0 0
      %2164 = vmatpush2.bf16.msra.mxu0 0
      %2165 = vmatprep.subr.bf16.mxu0 0
      %2166 = vmatpush2.bf16.msra.mxu0 0
      %2167 = vmatprep.subr.bf16.mxu0 0
      %2168 = vmatpush2.bf16.msra.mxu0 0
      %2169 = vmatprep.mubr.bf16.mxu0 0
      %2170 = vmatmul.mubr.bf16.gmra.mxu0 %v2132
      %v2171 = vpop.f32.mrf.mxu0
      %v2172 = vadd.f32 0.0, %v2171
      %v2173 = vpop.f32.mrf.mxu0
      %v2174 = vpop.f32.mrf.mxu0
      %v2175 = vpop.f32.mrf.mxu0
      %2176 = vdwg.mxu0
      %v2177 = vadd.f32 %v2128, %v2172
      %2178 = vst.msk [vmem:[#allocation2 + $0x38] sm:$0xff] %vm968, %v2177
      %v2179 = vld [vmem:[#allocation2] sm:$0xff]
      %v2180 = vld [vmem:[#allocation2 + $0x8] sm:$0xff]
      %v2181 = vld [vmem:[#allocation2 + $0x10] sm:$0xff]
      %v2182 = vld [vmem:[#allocation2 + $0x18] sm:$0xff]
      %v2183 = vld [vmem:[#allocation2 + $0x20] sm:$0xff]
      %v2184 = vld [vmem:[#allocation2 + $0x28] sm:$0xff]
      %v2185 = vld [vmem:[#allocation2 + $0x30] sm:$0xff]
      %v2186 = vld [vmem:[#allocation2 + $0x38] sm:$0xff]
      %2187 = vst.msk [vmem:[%s926] sm:$0xff] %vm968, %v2179
      %2188 = vst.msk [vmem:[%s926 + $0x8] sm:$0xff] %vm968, %v2180
      %2189 = vst.msk [vmem:[%s926 + $0x10] sm:$0xff] %vm968, %v2181
      %2190 = vst.msk [vmem:[%s926 + $0x18] sm:$0xff] %vm968, %v2182
      %2191 = vst.msk [vmem:[%s926 + $0x20] sm:$0xff] %vm968, %v2183
      %2192 = vst.msk [vmem:[%s926 + $0x28] sm:$0xff] %vm968, %v2184
      %2193 = vst.msk [vmem:[%s926 + $0x30] sm:$0xff] %vm968, %v2185
      %2194 = vst.msk [vmem:[%s926 + $0x38] sm:$0xff] %vm968, %v2186
      %s2195 = smul.u32 8, %s29
      %p2196 = scmp.lt.s32.totalorder %s28, 1
      %s2197 = scalar_select %p2196, %s28, 1
      %p2198 = scmp.lt.s32.totalorder %s2195, 7
      %s2199 = scalar_select %p2198, %s2195, 7
      %p2200 = scmp.lt.s32.totalorder %s27, 0
      %s2201 = scalar_select %p2200, %s27, 0
      %s2202 = sadd.s32 %s2201, %s2199
      %s2203 = smul.addr %s2197, 8
      %s2204 = sadd.s32 %s2202, %s2203
      %s2205 = smul.addr %s2204, 8
      %s2206 = scalar_lea.vmem %s11, %s2205
      // Predicated region
      $region65: #{downsample_forward.1} parent=63 // pred_check
        %p2207 = pneg %p379
      $region66: #{downsample_forward.1} parent=63 // pred_check_branch
        %2209 = sbr.rel (%p2207) target = $region68
      $region67: #{downsample_forward.1} parent=63 // pred_region
        %s2210 = smul.u32 8, %s29
      $region68: #{downsample_forward.1} parent=63 // pred_fallthru
        _
    $region64: #{downsample_forward.1} parent=5 // pred_fallthru
      _
    %p2211 = scmp.le.s32.totalorder 2, %s17
    // Predicated region
    $region69: #{downsample_forward.1} parent=5 // pred_check
      %p2212 = pneg %p2211
    $region70: #{downsample_forward.1} parent=5 // pred_check_branch
      %2214 = sbr.rel (%p2212) target = $region72
    $region71: #{downsample_forward.1} parent=5 // pred_region
      %s2215 = ssub.s32 %s17, 2
      // Predicated region
      $region73: #{downsample_forward.1} parent=71 // pred_check
        %p2216 = pneg %p385
      $region74: #{downsample_forward.1} parent=71 // pred_check_branch
        %2218 = sbr.rel (%p2216) target = $region76
      $region75: #{downsample_forward.1} parent=71 // pred_region
        %s2219 = smul.u32 8, %s32
        %p2220 = scmp.lt.s32.totalorder %s31, 1
        %s2221 = scalar_select %p2220, %s31, 1
        %p2222 = scmp.lt.s32.totalorder %s2219, 7
        %s2223 = scalar_select %p2222, %s2219, 7
        %p2224 = scmp.lt.s32.totalorder %s30, 0
        %s2225 = scalar_select %p2224, %s30, 0
        %s2226 = sadd.s32 %s2225, %s2223
        %s2227 = smul.addr %s2221, 8
        %s2228 = sadd.s32 %s2226, %s2227
        %s2229 = smul.addr %s2228, 8
        %s2230 = scalar_lea.vmem %s11, %s2229
      $region76: #{downsample_forward.1} parent=71 // pred_fallthru
        _
    $region72: #{downsample_forward.1} parent=5 // pred_fallthru
      _
  $region6: #{downsample_forward.1} parent=0 // loop_footer
    %s21 = sadd.s32 1, %s17
  $region7: #{downsample_forward.1} parent=0 // loop_footer_branch
    %16 = sbr.rel target = $region3
  $region8: #{downsample_forward.1} parent=0 // loop_exit
    _

</llo_original>
